<compile_context>
chip_gen: v7x
topology: tpu7x:2x2x1
jax: 0.10.0
libtpu: 0.0.40
codegen_flags: <defaults>
</compile_context>

<pallas_src>
import functools

import jax
import jax.numpy as jnp
from jax.experimental import pallas as pl
from jax.experimental.pallas import tpu as pltpu


def _round_up(x, m):
    return -(-x // m) * m


def _choose_batch_tile(B, K, vmem_budget_bytes=8 * 1024 * 1024):
    """Largest batch tile whose double-buffered blocks + live (K,K) temporaries fit a
    conservative per-step VMEM budget (fits v5e's 16 MiB scoped default, v7x's 64 MiB)."""
    lane, sub = 128, 8
    per_item_blocks = 4 * (
        _round_up(K, sub) * lane                                 # (K, 4) ref pts+mask (lane padded)
        + sub * _round_up(K, lane)                               # (4, K) src pts+mask (sublane padded)
        + _round_up(K + 1, sub) * _round_up(K + 1, lane)         # (K+1, K+1) scores block
    )
    per_item_tmps = 4 * 4 * _round_up(K, sub) * _round_up(K, lane)  # ~4 live (K,K) f32 temporaries
    per_item = 2 * per_item_blocks + per_item_tmps               # x2: double-buffered input blocks
    tb = max(1, vmem_budget_bytes // per_item)
    tb = min(tb, B)
    if B >= 2:
        tb = min(tb, -(-B // 2))   # keep >= 2 grid steps so v7x's 2 TensorCores both get work
    return int(tb)


def fine_matching_loss(ref_points, src_points, ref_masks, src_masks,
                       matching_scores, transform,
                       positive_radius=0.05, batch_tile=None):
    """Pallas TPU implementation of FineMatchingLoss.forward."""
    B, K, _ = ref_points.shape
    assert matching_scores.shape == (B, K + 1, K + 1), matching_scores.shape

    f32 = jnp.float32
    TB = int(batch_tile) if batch_tile is not None else _choose_batch_tile(B, K)
    TB = max(1, min(TB, B))
    nb = -(-B // TB)                 # cdiv; last tile may be ragged
    ragged = (B % TB) != 0

    # Pack masks into the point operands (4th channel / 4th sublane row): fewer per-step
    # DMAs and far less lane padding than separate mask blocks. src points pre-transposed
    # to (B, 3, K) so each coordinate lands on lanes -> distance matrix via pure VPU
    # broadcasts, no in-kernel transposes and no tiny 3-wide MXU matmuls.
    ref_pm = jnp.concatenate(
        [ref_points.astype(f32), ref_masks.astype(f32)[:, :, None]], axis=2)     # (B, K, 4)
    src_pm = jnp.concatenate(
        [jnp.swapaxes(src_points.astype(f32), 1, 2),
         src_masks.astype(f32)[:, None, :]], axis=1)                              # (B, 4, K)
    scores = matching_scores.astype(f32)                                          # (B, K+1, K+1)

    # Flattened rigid transform: rotation row-major (9) + translation (3) -> SMEM scalars.
    tf_flat = jnp.concatenate(
        [transform[:3, :3].reshape(-1), transform[:3, 3].reshape(-1)]).astype(f32)  # (12,)

    r2 = float(positive_radius) ** 2

    def kernel(tf_ref, refpm_ref, srcpm_ref, sc_ref, out_ref):
        ref_mask = jnp.where(refpm_ref[:, :, 3:4] > 0.5, 1.0, 0.0)   # (TB, K, 1)
        src_mask = jnp.where(srcpm_ref[:, 3:4, :] > 0.5, 1.0, 0.0)   # (TB, 1, K)

        if ragged:
            # zero out the garbage rows of the (partial) last batch tile
            base = pl.program_id(0) * TB
            bv_r = (jax.lax.broadcasted_iota(jnp.int32, (TB, K, 1), 0) + base) < B
            bv_s = (jax.lax.broadcasted_iota(jnp.int32, (TB, 1, K), 0) + base) < B
            ref_mask = jnp.where(bv_r, ref_mask, 0.0)
            src_mask = jnp.where(bv_s, src_mask, 0.0)

        s0 = srcpm_ref[:, 0:1, :]            # (TB, 1, K) raw src coordinates
        s1 = srcpm_ref[:, 1:2, :]
        s2 = srcpm_ref[:, 2:3, :]

        # dists[b,i,j] = sum_d (ref[b,i,d] - (R src[b,j] + t)[d])^2  (fused, one accumulator)
        dists = None
        for d in range(3):
            rd = refpm_ref[:, :, d:d + 1]                              # (TB, K, 1)
            sd = (tf_ref[3 * d + 0] * s0 + tf_ref[3 * d + 1] * s1
                  + tf_ref[3 * d + 2] * s2 + tf_ref[9 + d])            # (TB, 1, K)
            diff = rd - sd                                             # (TB, K, K)
            sq = diff * diff
            dists = sq if dists is None else dists + sq

        # gt_corr_map = (dists < r^2) & ref_mask & src_mask
        corr = jnp.where(dists < r2, 1.0, 0.0) * ref_mask * src_mask   # (TB, K, K)

        row_sum = jnp.sum(corr, axis=2, keepdims=True)                 # (TB, K, 1)
        col_sum = jnp.sum(corr, axis=1, keepdims=True)                 # (TB, 1, K)
        slack_row = jnp.where(row_sum == 0.0, 1.0, 0.0) * ref_mask     # (TB, K, 1)
        slack_col = jnp.where(col_sum == 0.0, 1.0, 0.0) * src_mask     # (TB, 1, K)

        main_sc = sc_ref[:, :K, :K]                                    # (TB, K, K)
        row_sc = sc_ref[:, :K, K:K + 1]                                # (TB, K, 1)  slack column
        col_sc = sc_ref[:, K:K + 1, :K]                                # (TB, 1, K)  slack row

        # select (not multiply) so garbage reads in a ragged tile can never propagate
        num = (jnp.sum(jnp.where(corr > 0.0, main_sc, 0.0))
               + jnp.sum(jnp.where(slack_row > 0.0, row_sc, 0.0))
               + jnp.sum(jnp.where(slack_col > 0.0, col_sc, 0.0)))
        cnt = jnp.sum(corr) + jnp.sum(slack_row) + jnp.sum(slack_col)

        # lane-dense per-step partial block: lane 0 = sum(labels*scores), lane 1 = count
        lane = jax.lax.broadcasted_iota(jnp.int32, (1, 8, 128), 2)
        out_ref[...] = jnp.where(lane == 0, num, jnp.where(lane == 1, cnt, 0.0))

    partials = pl.pallas_call(
        kernel,
        grid=(nb,),
        in_specs=[
            pl.BlockSpec(memory_space=pltpu.MemorySpace.SMEM),            # transform (12,)
            pl.BlockSpec((TB, K, 4), lambda i: (i, 0, 0)),                # ref points + mask
            pl.BlockSpec((TB, 4, K), lambda i: (i, 0, 0)),                # src points^T + mask
            pl.BlockSpec((TB, K + 1, K + 1), lambda i: (i, 0, 0)),        # matching scores
        ],
        out_specs=pl.BlockSpec((1, 8, 128), lambda i: (i, 0, 0)),
        out_shape=jax.ShapeDtypeStruct((nb, 8, 128), f32),
        compiler_params=pltpu.CompilerParams(
            dimension_semantics=("parallel",),
            vmem_limit_bytes=32 * 1024 * 1024),
    )(tf_flat, ref_pm, src_pm, scores)

    total_num = jnp.sum(partials[:, 0, 0])
    total_cnt = jnp.sum(partials[:, 0, 1])
    # guard the degenerate empty-label case (PyTorch's .mean() would return NaN)
    return -total_num / jnp.maximum(total_cnt, 1.0)


def _reference_fine_matching_loss(ref_pts, src_pts, ref_masks, src_masks,
                                  scores, transform, positive_radius):
    """Straight JAX transcription of the PyTorch module (for validation)."""
    rot = transform[:3, :3]
    t = transform[:3, 3]
    src_t = src_pts @ rot.T + t
    xy = jnp.einsum('bic,bjc->bij', ref_pts, src_t)
    x2 = jnp.sum(ref_pts ** 2, axis=-1)[:, :, None]
    y2 = jnp.sum(src_t ** 2, axis=-1)[:, None, :]
    dists = jnp.maximum(x2 - 2.0 * xy + y2, 0.0)
    gt_masks = ref_masks[:, :, None] & src_masks[:, None, :]
    gt_corr = (dists < positive_radius ** 2) & gt_masks
    slack_row = (jnp.sum(gt_corr, axis=2) == 0) & ref_masks
    slack_col = (jnp.sum(gt_corr, axis=1) == 0) & src_masks
    labels = jnp.zeros(scores.shape, dtype=bool)
    labels = labels.at[:, :-1, :-1].set(gt_corr)
    labels = labels.at[:, :-1, -1].set(slack_row)
    labels = labels.at[:, -1, :-1].set(slack_col)
    num = jnp.sum(jnp.where(labels, scores, 0.0))
    cnt = jnp.sum(labels).astype(jnp.float32)
    return -num / cnt


if __name__ == "__main__":
    key = jax.random.PRNGKey(0)
    B, K = 12, 32                 # node correspondences, knn points per correspondence
    positive_radius = 0.05

    k1, k2, k3, k4, k5, k6, k7 = jax.random.split(key, 7)

    # rigid transform: rotation about z + translation
    theta = 0.3
    c, s = jnp.cos(theta), jnp.sin(theta)
    rot = jnp.array([[c, -s, 0.0], [s, c, 0.0], [0.0, 0.0, 1.0]], jnp.float32)
    t = jnp.array([0.1, -0.2, 0.05], jnp.float32)
    transform = jnp.eye(4, dtype=jnp.float32).at[:3, :3].set(rot).at[:3, 3].set(t)

    # ref points: jittered 4x4x2 grid (min separation ~0.6 m) so no pair distance
    # lands near the positive_radius decision boundary.
    gx, gy, gz = jnp.meshgrid(jnp.arange(4.0), jnp.arange(4.0), jnp.arange(2.0),
                              indexing="ij")
    grid_pts = jnp.stack([gx, gy, gz], axis=-1).reshape(1, K, 3).astype(jnp.float32)
    ref_points = grid_pts + 0.1 * jax.random.uniform(
        k1, (B, K, 3), jnp.float32, minval=-1.0, maxval=1.0)

    # src points: for each ref point place the transformed src either clearly inside
    # (< 0.03) or clearly outside (> 0.15) the positive radius.
    dirs = jax.random.normal(k2, (B, K, 3), jnp.float32)
    dirs = dirs / jnp.linalg.norm(dirs, axis=-1, keepdims=True)
    near = jax.random.uniform(k6, (B, K, 1)) < 0.7
    mag = jnp.where(near,
                    jax.random.uniform(k3, (B, K, 1), minval=0.0, maxval=0.03),
                    jax.random.uniform(k3, (B, K, 1), minval=0.15, maxval=0.35))
    target = ref_points + dirs * mag                        # desired transformed src
    src_points = jnp.einsum('bkc,cd->bkd', target - t, rot)   # apply_transform(src) == target

    ref_masks = jax.random.uniform(k4, (B, K)) < 0.85
    src_masks = jax.random.uniform(k5, (B, K)) < 0.85

    # sinkhorn-style log scores over the (K+1, K+1) assignment matrix (with slacks)
    matching_scores = jax.nn.log_softmax(
        jax.random.normal(k7, (B, K + 1, K + 1), jnp.float32), axis=-1)

    loss_fn = jax.jit(functools.partial(fine_matching_loss,
                                        positive_radius=positive_radius))
    loss = loss_fn(ref_points, src_points, ref_masks, src_masks,
                   matching_scores, transform)
    loss = jax.block_until_ready(loss)

    ref_loss = _reference_fine_matching_loss(
        ref_points, src_points, ref_masks, src_masks,
        matching_scores, transform, positive_radius)

    assert jnp.isfinite(loss), "loss is not finite"
    assert jnp.allclose(loss, ref_loss, rtol=1e-5, atol=1e-6), (loss, ref_loss)
    print("KERNEL_OK")
</pallas_src>

<mosaic_0001>
module attributes {stable_mosaic.version = 11 : i64} {
  func.func @kernel(%arg0: i32, %arg1: memref<12xf32, #tpu.memory_space<smem>>, %arg2: memref<6x32x4xf32, #tpu.memory_space<vmem>>, %arg3: memref<6x4x32xf32, #tpu.memory_space<vmem>>, %arg4: memref<6x33x33xf32, #tpu.memory_space<vmem>>, %arg5: memref<1x8x128xf32, #tpu.memory_space<vmem>>) attributes {dimension_semantics = [#tpu.dimension_semantics<parallel>], iteration_bounds = array<i64: 2>, scalar_prefetch = 0 : i64, scratch_operands = 0 : i64, tpu.core_type = #tpu.core_type<tc>, window_params = [{transform_indices = @transform_0, window_bounds = array<i64: 12>}, {transform_indices = @transform_1, window_bounds = array<i64: 6, 32, 4>}, {transform_indices = @transform_2, window_bounds = array<i64: 6, 4, 32>}, {transform_indices = @transform_3, window_bounds = array<i64: 6, 33, 33>}, {transform_indices = @transform_4, window_bounds = array<i64: 1, 8, 128>}]} {
    %c0 = arith.constant 0 : index
    %c0_0 = arith.constant 0 : index
    %c3 = arith.constant 3 : index
    %0 = vector.load %arg2[%c0, %c0_0, %c3] : memref<6x32x4xf32, #tpu.memory_space<vmem>>, vector<6x32x1xf32>
    %cst = arith.constant 5.000000e-01 : f32
    %1 = vector.broadcast %cst : f32 to vector<6x32x1xf32>
    %2 = arith.cmpf ogt, %0, %1 : vector<6x32x1xf32>
    %cst_1 = arith.constant 1.000000e+00 : f32
    %cst_2 = arith.constant 0.000000e+00 : f32
    %3 = vector.broadcast %cst_1 : f32 to vector<6x32x1xf32>
    %4 = vector.broadcast %cst_2 : f32 to vector<6x32x1xf32>
    %5 = arith.select %2, %3, %4 : vector<6x32x1xi1>, vector<6x32x1xf32>
    %c0_3 = arith.constant 0 : index
    %c3_4 = arith.constant 3 : index
    %c0_5 = arith.constant 0 : index
    %6 = vector.load %arg3[%c0_3, %c3_4, %c0_5] : memref<6x4x32xf32, #tpu.memory_space<vmem>>, vector<6x1x32xf32>
    %cst_6 = arith.constant 5.000000e-01 : f32
    %7 = vector.broadcast %cst_6 : f32 to vector<6x1x32xf32>
    %8 = arith.cmpf ogt, %6, %7 : vector<6x1x32xf32>
    %cst_7 = arith.constant 1.000000e+00 : f32
    %cst_8 = arith.constant 0.000000e+00 : f32
    %9 = vector.broadcast %cst_7 : f32 to vector<6x1x32xf32>
    %10 = vector.broadcast %cst_8 : f32 to vector<6x1x32xf32>
    %11 = arith.select %8, %9, %10 : vector<6x1x32xi1>, vector<6x1x32xf32>
    %c0_9 = arith.constant 0 : index
    %c0_10 = arith.constant 0 : index
    %c0_11 = arith.constant 0 : index
    %12 = vector.load %arg3[%c0_9, %c0_10, %c0_11] : memref<6x4x32xf32, #tpu.memory_space<vmem>>, vector<6x1x32xf32>
    %c0_12 = arith.constant 0 : index
    %c1 = arith.constant 1 : index
    %c0_13 = arith.constant 0 : index
    %13 = vector.load %arg3[%c0_12, %c1, %c0_13] : memref<6x4x32xf32, #tpu.memory_space<vmem>>, vector<6x1x32xf32>
    %c0_14 = arith.constant 0 : index
    %c2 = arith.constant 2 : index
    %c0_15 = arith.constant 0 : index
    %14 = vector.load %arg3[%c0_14, %c2, %c0_15] : memref<6x4x32xf32, #tpu.memory_space<vmem>>, vector<6x1x32xf32>
    %c0_16 = arith.constant 0 : index
    %c0_17 = arith.constant 0 : index
    %c0_18 = arith.constant 0 : index
    %15 = vector.load %arg2[%c0_16, %c0_17, %c0_18] : memref<6x32x4xf32, #tpu.memory_space<vmem>>, vector<6x32x1xf32>
    %c0_19 = arith.constant 0 : index
    %16 = memref.load %arg1[%c0_19] : memref<12xf32, #tpu.memory_space<smem>>
    %17 = vector.broadcast %16 : f32 to vector<6x1x32xf32>
    %18 = arith.mulf %17, %12 : vector<6x1x32xf32>
    %c1_20 = arith.constant 1 : index
    %19 = memref.load %arg1[%c1_20] : memref<12xf32, #tpu.memory_space<smem>>
    %20 = vector.broadcast %19 : f32 to vector<6x1x32xf32>
    %21 = arith.mulf %20, %13 : vector<6x1x32xf32>
    %22 = arith.addf %18, %21 : vector<6x1x32xf32>
    %c2_21 = arith.constant 2 : index
    %23 = memref.load %arg1[%c2_21] : memref<12xf32, #tpu.memory_space<smem>>
    %24 = vector.broadcast %23 : f32 to vector<6x1x32xf32>
    %25 = arith.mulf %24, %14 : vector<6x1x32xf32>
    %26 = arith.addf %22, %25 : vector<6x1x32xf32>
    %c9 = arith.constant 9 : index
    %27 = memref.load %arg1[%c9] : memref<12xf32, #tpu.memory_space<smem>>
    %28 = vector.broadcast %27 : f32 to vector<6x1x32xf32>
    %29 = arith.addf %26, %28 : vector<6x1x32xf32>
    %30 = vector.broadcast %15 : vector<6x32x1xf32> to vector<6x32x32xf32>
    %31 = vector.broadcast %29 : vector<6x1x32xf32> to vector<6x32x32xf32>
    %32 = arith.subf %30, %31 : vector<6x32x32xf32>
    %33 = arith.mulf %32, %32 : vector<6x32x32xf32>
    %c0_22 = arith.constant 0 : index
    %c0_23 = arith.constant 0 : index
    %c1_24 = arith.constant 1 : index
    %34 = vector.load %arg2[%c0_22, %c0_23, %c1_24] : memref<6x32x4xf32, #tpu.memory_space<vmem>>, vector<6x32x1xf32>
    %c3_25 = arith.constant 3 : index
    %35 = memref.load %arg1[%c3_25] : memref<12xf32, #tpu.memory_space<smem>>
    %36 = vector.broadcast %35 : f32 to vector<6x1x32xf32>
    %37 = arith.mulf %36, %12 : vector<6x1x32xf32>
    %c4 = arith.constant 4 : index
    %38 = memref.load %arg1[%c4] : memref<12xf32, #tpu.memory_space<smem>>
    %39 = vector.broadcast %38 : f32 to vector<6x1x32xf32>
    %40 = arith.mulf %39, %13 : vector<6x1x32xf32>
    %41 = arith.addf %37, %40 : vector<6x1x32xf32>
    %c5 = arith.constant 5 : index
    %42 = memref.load %arg1[%c5] : memref<12xf32, #tpu.memory_space<smem>>
    %43 = vector.broadcast %42 : f32 to vector<6x1x32xf32>
    %44 = arith.mulf %43, %14 : vector<6x1x32xf32>
    %45 = arith.addf %41, %44 : vector<6x1x32xf32>
    %c10 = arith.constant 10 : index
    %46 = memref.load %arg1[%c10] : memref<12xf32, #tpu.memory_space<smem>>
    %47 = vector.broadcast %46 : f32 to vector<6x1x32xf32>
    %48 = arith.addf %45, %47 : vector<6x1x32xf32>
    %49 = vector.broadcast %34 : vector<6x32x1xf32> to vector<6x32x32xf32>
    %50 = vector.broadcast %48 : vector<6x1x32xf32> to vector<6x32x32xf32>
    %51 = arith.subf %49, %50 : vector<6x32x32xf32>
    %52 = arith.mulf %51, %51 : vector<6x32x32xf32>
    %53 = arith.addf %33, %52 : vector<6x32x32xf32>
    %c0_26 = arith.constant 0 : index
    %c0_27 = arith.constant 0 : index
    %c2_28 = arith.constant 2 : index
    %54 = vector.load %arg2[%c0_26, %c0_27, %c2_28] : memref<6x32x4xf32, #tpu.memory_space<vmem>>, vector<6x32x1xf32>
    %c6 = arith.constant 6 : index
    %55 = memref.load %arg1[%c6] : memref<12xf32, #tpu.memory_space<smem>>
    %56 = vector.broadcast %55 : f32 to vector<6x1x32xf32>
    %57 = arith.mulf %56, %12 : vector<6x1x32xf32>
    %c7 = arith.constant 7 : index
    %58 = memref.load %arg1[%c7] : memref<12xf32, #tpu.memory_space<smem>>
    %59 = vector.broadcast %58 : f32 to vector<6x1x32xf32>
    %60 = arith.mulf %59, %13 : vector<6x1x32xf32>
    %61 = arith.addf %57, %60 : vector<6x1x32xf32>
    %c8 = arith.constant 8 : index
    %62 = memref.load %arg1[%c8] : memref<12xf32, #tpu.memory_space<smem>>
    %63 = vector.broadcast %62 : f32 to vector<6x1x32xf32>
    %64 = arith.mulf %63, %14 : vector<6x1x32xf32>
    %65 = arith.addf %61, %64 : vector<6x1x32xf32>
    %c11 = arith.constant 11 : index
    %66 = memref.load %arg1[%c11] : memref<12xf32, #tpu.memory_space<smem>>
    %67 = vector.broadcast %66 : f32 to vector<6x1x32xf32>
    %68 = arith.addf %65, %67 : vector<6x1x32xf32>
    %69 = vector.broadcast %54 : vector<6x32x1xf32> to vector<6x32x32xf32>
    %70 = vector.broadcast %68 : vector<6x1x32xf32> to vector<6x32x32xf32>
    %71 = arith.subf %69, %70 : vector<6x32x32xf32>
    %72 = arith.mulf %71, %71 : vector<6x32x32xf32>
    %73 = arith.addf %53, %72 : vector<6x32x32xf32>
    %cst_29 = arith.constant 2.500000e-03 : f32
    %74 = vector.broadcast %cst_29 : f32 to vector<6x32x32xf32>
    %75 = arith.cmpf olt, %73, %74 : vector<6x32x32xf32>
    %cst_30 = arith.constant 1.000000e+00 : f32
    %cst_31 = arith.constant 0.000000e+00 : f32
    %76 = vector.broadcast %cst_30 : f32 to vector<6x32x32xf32>
    %77 = vector.broadcast %cst_31 : f32 to vector<6x32x32xf32>
    %78 = arith.select %75, %76, %77 : vector<6x32x32xi1>, vector<6x32x32xf32>
    %79 = vector.broadcast %5 : vector<6x32x1xf32> to vector<6x32x32xf32>
    %80 = arith.mulf %78, %79 : vector<6x32x32xf32>
    %81 = vector.broadcast %11 : vector<6x1x32xf32> to vector<6x32x32xf32>
    %82 = arith.mulf %80, %81 : vector<6x32x32xf32>
    %cst_32 = arith.constant dense<0.000000e+00> : vector<6x32xf32>
    %83 = vector.multi_reduction <add>, %82, %cst_32 [2] : vector<6x32x32xf32> to vector<6x32xf32>
    %84 = vector.shape_cast %83 : vector<6x32xf32> to vector<6x32x1xf32>
    %cst_33 = arith.constant dense<0.000000e+00> : vector<6x32xf32>
    %85 = vector.multi_reduction <add>, %82, %cst_33 [1] : vector<6x32x32xf32> to vector<6x32xf32>
    %86 = vector.shape_cast %85 : vector<6x32xf32> to vector<6x1x32xf32>
    %cst_34 = arith.constant 0.000000e+00 : f32
    %87 = vector.broadcast %cst_34 : f32 to vector<6x32x1xf32>
    %88 = arith.cmpf oeq, %84, %87 : vector<6x32x1xf32>
    %cst_35 = arith.constant 1.000000e+00 : f32
    %cst_36 = arith.constant 0.000000e+00 : f32
    %89 = vector.broadcast %cst_35 : f32 to vector<6x32x1xf32>
    %90 = vector.broadcast %cst_36 : f32 to vector<6x32x1xf32>
    %91 = arith.select %88, %89, %90 : vector<6x32x1xi1>, vector<6x32x1xf32>
    %92 = arith.mulf %91, %5 : vector<6x32x1xf32>
    %cst_37 = arith.constant 0.000000e+00 : f32
    %93 = vector.broadcast %cst_37 : f32 to vector<6x1x32xf32>
    %94 = arith.cmpf oeq, %86, %93 : vector<6x1x32xf32>
    %cst_38 = arith.constant 1.000000e+00 : f32
    %cst_39 = arith.constant 0.000000e+00 : f32
    %95 = vector.broadcast %cst_38 : f32 to vector<6x1x32xf32>
    %96 = vector.broadcast %cst_39 : f32 to vector<6x1x32xf32>
    %97 = arith.select %94, %95, %96 : vector<6x1x32xi1>, vector<6x1x32xf32>
    %98 = arith.mulf %97, %11 : vector<6x1x32xf32>
    %c0_40 = arith.constant 0 : index
    %c0_41 = arith.constant 0 : index
    %c0_42 = arith.constant 0 : index
    %99 = vector.load %arg4[%c0_40, %c0_41, %c0_42] : memref<6x33x33xf32, #tpu.memory_space<vmem>>, vector<6x32x32xf32>
    %c0_43 = arith.constant 0 : index
    %c0_44 = arith.constant 0 : index
    %c32 = arith.constant 32 : index
    %100 = vector.load %arg4[%c0_43, %c0_44, %c32] : memref<6x33x33xf32, #tpu.memory_space<vmem>>, vector<6x32x1xf32>
    %c0_45 = arith.constant 0 : index
    %c32_46 = arith.constant 32 : index
    %c0_47 = arith.constant 0 : index
    %101 = vector.load %arg4[%c0_45, %c32_46, %c0_47] : memref<6x33x33xf32, #tpu.memory_space<vmem>>, vector<6x1x32xf32>
    %cst_48 = arith.constant 0.000000e+00 : f32
    %102 = vector.broadcast %cst_48 : f32 to vector<6x32x32xf32>
    %103 = arith.cmpf ogt, %82, %102 : vector<6x32x32xf32>
    %cst_49 = arith.constant 0.000000e+00 : f32
    %104 = vector.broadcast %cst_49 : f32 to vector<6x32x32xf32>
    %105 = arith.select %103, %99, %104 : vector<6x32x32xi1>, vector<6x32x32xf32>
    %106 = vector.shape_cast %105 : vector<6x32x32xf32> to vector<1x6x32x32xf32>
    %cst_50 = arith.constant dense<0.000000e+00> : vector<1xf32>
    %107 = vector.multi_reduction <add>, %106, %cst_50 [1, 2, 3] : vector<1x6x32x32xf32> to vector<1xf32>
    %108 = vector.shape_cast %107 : vector<1xf32> to vector<1x1x1x1xf32>
    %109 = vector.extract %108[0, 0, 0, 0] : f32 from vector<1x1x1x1xf32>
    %cst_51 = arith.constant 0.000000e+00 : f32
    %110 = vector.broadcast %cst_51 : f32 to vector<6x32x1xf32>
    %111 = arith.cmpf ogt, %92, %110 : vector<6x32x1xf32>
    %cst_52 = arith.constant 0.000000e+00 : f32
    %112 = vector.broadcast %cst_52 : f32 to vector<6x32x1xf32>
    %113 = arith.select %111, %100, %112 : vector<6x32x1xi1>, vector<6x32x1xf32>
    %114 = vector.shape_cast %113 : vector<6x32x1xf32> to vector<1x6x32x1xf32>
    %cst_53 = arith.constant dense<0.000000e+00> : vector<1xf32>
    %115 = vector.multi_reduction <add>, %114, %cst_53 [1, 2, 3] : vector<1x6x32x1xf32> to vector<1xf32>
    %116 = vector.shape_cast %115 : vector<1xf32> to vector<1x1x1x1xf32>
    %117 = vector.extract %116[0, 0, 0, 0] : f32 from vector<1x1x1x1xf32>
    %118 = arith.addf %109, %117 : f32
    %cst_54 = arith.constant 0.000000e+00 : f32
    %119 = vector.broadcast %cst_54 : f32 to vector<6x1x32xf32>
    %120 = arith.cmpf ogt, %98, %119 : vector<6x1x32xf32>
    %cst_55 = arith.constant 0.000000e+00 : f32
    %121 = vector.broadcast %cst_55 : f32 to vector<6x1x32xf32>
    %122 = arith.select %120, %101, %121 : vector<6x1x32xi1>, vector<6x1x32xf32>
    %123 = vector.shape_cast %122 : vector<6x1x32xf32> to vector<1x6x1x32xf32>
    %cst_56 = arith.constant dense<0.000000e+00> : vector<1xf32>
    %124 = vector.multi_reduction <add>, %123, %cst_56 [1, 2, 3] : vector<1x6x1x32xf32> to vector<1xf32>
    %125 = vector.shape_cast %124 : vector<1xf32> to vector<1x1x1x1xf32>
    %126 = vector.extract %125[0, 0, 0, 0] : f32 from vector<1x1x1x1xf32>
    %127 = arith.addf %118, %126 : f32
    %128 = vector.shape_cast %82 : vector<6x32x32xf32> to vector<1x6x32x32xf32>
    %cst_57 = arith.constant dense<0.000000e+00> : vector<1xf32>
    %129 = vector.multi_reduction <add>, %128, %cst_57 [1, 2, 3] : vector<1x6x32x32xf32> to vector<1xf32>
    %130 = vector.shape_cast %129 : vector<1xf32> to vector<1x1x1x1xf32>
    %131 = vector.extract %130[0, 0, 0, 0] : f32 from vector<1x1x1x1xf32>
    %132 = vector.shape_cast %92 : vector<6x32x1xf32> to vector<1x6x32x1xf32>
    %cst_58 = arith.constant dense<0.000000e+00> : vector<1xf32>
    %133 = vector.multi_reduction <add>, %132, %cst_58 [1, 2, 3] : vector<1x6x32x1xf32> to vector<1xf32>
    %134 = vector.shape_cast %133 : vector<1xf32> to vector<1x1x1x1xf32>
    %135 = vector.extract %134[0, 0, 0, 0] : f32 from vector<1x1x1x1xf32>
    %136 = arith.addf %131, %135 : f32
    %137 = vector.shape_cast %98 : vector<6x1x32xf32> to vector<1x6x1x32xf32>
    %cst_59 = arith.constant dense<0.000000e+00> : vector<1xf32>
    %138 = vector.multi_reduction <add>, %137, %cst_59 [1, 2, 3] : vector<1x6x1x32xf32> to vector<1xf32>
    %139 = vector.shape_cast %138 : vector<1xf32> to vector<1x1x1x1xf32>
    %140 = vector.extract %139[0, 0, 0, 0] : f32 from vector<1x1x1x1xf32>
    %141 = arith.addf %136, %140 : f32
    %142 = tpu.iota {dimensions = array<i32: 2>} : vector<1x8x128xi32>
    %c0_i32 = arith.constant 0 : i32
    %143 = vector.broadcast %c0_i32 : i32 to vector<1x8x128xi32>
    %144 = arith.cmpi eq, %142, %143 : vector<1x8x128xi32>
    %c1_i32 = arith.constant 1 : i32
    %145 = vector.broadcast %c1_i32 : i32 to vector<1x8x128xi32>
    %146 = arith.cmpi eq, %142, %145 : vector<1x8x128xi32>
    %cst_60 = arith.constant 0.000000e+00 : f32
    %147 = vector.broadcast %141 : f32 to vector<1x8x128xf32>
    %148 = vector.broadcast %cst_60 : f32 to vector<1x8x128xf32>
    %149 = arith.select %146, %147, %148 : vector<1x8x128xi1>, vector<1x8x128xf32>
    %150 = vector.broadcast %127 : f32 to vector<1x8x128xf32>
    %151 = arith.select %144, %150, %149 : vector<1x8x128xi1>, vector<1x8x128xf32>
    %c0_61 = arith.constant 0 : index
    %c0_62 = arith.constant 0 : index
    %c0_63 = arith.constant 0 : index
    %152 = vector.load %arg5[%c0_61, %c0_62, %c0_63] : memref<1x8x128xf32, #tpu.memory_space<vmem>>, vector<1x8x128xf32>
    tpu.vector_store %arg5[%c0_61, %c0_62, %c0_63], %151 {strides = array<i32>} : memref<1x8x128xf32, #tpu.memory_space<vmem>>, vector<1x8x128xf32>,
    return
  }
  func.func @transform_0(%arg0: i32) -> i32 {
    %c0_i32 = arith.constant 0 : i32
    %c0_i32_0 = arith.constant 0 : i32
    return %c0_i32 : i32
  }
  func.func @transform_1(%arg0: i32) -> (i32, i32, i32) {
    %c0_i32 = arith.constant 0 : i32
    %c0_i32_0 = arith.constant 0 : i32
    %c0_i32_1 = arith.constant 0 : i32
    return %arg0, %c0_i32, %c0_i32_0 : i32, i32, i32
  }
  func.func @transform_2(%arg0: i32) -> (i32, i32, i32) {
    %c0_i32 = arith.constant 0 : i32
    %c0_i32_0 = arith.constant 0 : i32
    %c0_i32_1 = arith.constant 0 : i32
    return %arg0, %c0_i32, %c0_i32_0 : i32, i32, i32
  }
  func.func @transform_3(%arg0: i32) -> (i32, i32, i32) {
    %c0_i32 = arith.constant 0 : i32
    %c0_i32_0 = arith.constant 0 : i32
    %c0_i32_1 = arith.constant 0 : i32
    return %arg0, %c0_i32, %c0_i32_0 : i32, i32, i32
  }
  func.func @transform_4(%arg0: i32) -> (i32, i32, i32) {
    %c0_i32 = arith.constant 0 : i32
    %c0_i32_0 = arith.constant 0 : i32
    %c0_i32_1 = arith.constant 0 : i32
    return %arg0, %c0_i32, %c0_i32_0 : i32, i32, i32
  }
}

</mosaic_0001>

<llo_original>
// kernel: fine_matching_loss.1
$region0: #{fine_matching_loss.1}
  #allocation0 [shape = 'u32[]', space=smem, size = 0x4, offset = 0x4, fixed_abs, tag = 'smem constant byte address 0x4 - core index']
  #allocation1 [shape = 'u32[144,128]{1,0:T(1,128)}', space=vmem, size = 0x12000, scoped, tag = 'internal scratch']
  %s0 = inlined_call_operand.vmem [shape: f32[12], index: 0, kind: input, shape index: {}]
  %s1 = inlined_call_operand.vmem [shape: f32[12,32,4], index: 1, kind: input, shape index: {}]
  %s2 = inlined_call_operand.vmem [shape: f32[12,4,32], index: 2, kind: input, shape index: {}]
  %s3 = inlined_call_operand.vmem [shape: f32[12,33,33], index: 3, kind: input, shape index: {}]
  %s4 = inlined_call_operand.vmem [shape: f32[2,8,128], index: 4, kind: output, shape index: {}]
  %s5 = sld [smem:[#allocation0]]
  $region53: #{fine_matching_loss.1} parent=0
    _
  %s7 = ssub.s32 1, %s5
  %s8 = scalar_select 0, %s7, %s5
  $region1: #{fine_matching_loss.1} parent=0
    #allocation2 [shape = 'u8[512]{0}', space=smem, size = 0x200, scoped, tag = 'input window, operand 0, single buffered']
    #allocation3 [shape = 's32[2]{0}', space=sflag, size = 0x8, scoped, tag = 'scoped memory for fine_matching_loss.1']
    %9 = vsyncpa [#allocation3], 0
    loop: start=0, step=1, limit=4
    $region2: #{fine_matching_loss.1} parent=1 // loop_pre_header
      _
    $region3: #{fine_matching_loss.1} parent=1 // loop_header
      %s11 = sphi 0, %s15
      %p12 = scmp.ge.s32.totalorder %s11, 4
      %s19 = sphi 0, %s19
      %s21 = sphi 0, %s19
      %s22 = sphi 0, %s21
      %s36 = sphi 0, %s22
      %s42 = sphi 0, %s44
      %s45 = sphi 0, %s42
      %s46 = sphi 0, %s45
      %s62 = sphi 0, %s46
      %s68 = sphi 0, %s70
      %s71 = sphi 0, %s68
      %s72 = sphi 0, %s71
      %s88 = sphi 0, %s72
      %s94 = sphi 0, %s96
      %s97 = sphi 0, %s94
      %s98 = sphi 0, %s97
      %s114 = sphi 0, %s98
      %s120 = sphi 0, %s122
      %s123 = sphi 0, %s120
      %s124 = sphi 0, %s123
      %s140 = sphi 0, %s124
    $region4: #{fine_matching_loss.1} parent=1 // loop_header_branch
      %14 = sbr.rel (%p12) target = $region8
    $region5: #{fine_matching_loss.1} parent=1 // loop_body
      %s16 = ssub.s32 %s11, 1
      %s17 = ssub.s32 %s11, 2
      %s18 = sadd.s32 %s11, 1
      %s20 = sadd.s32 %s19, 1
      %p23 = scmp.eq.s32.totalorder %s11, 1
      %p24 = scmp.ne.s32.totalorder %s19, %s21
      %p25 = scmp.eq.s32.totalorder %s11, 0
      %p26 = por %p24, %p25
      %p27 = scmp.ne.s32.totalorder %s19, %s21
      %p28 = scmp.eq.s32.totalorder %s16, 1
      %p29 = por %p27, %p28
      %p30 = scmp.ne.s32.totalorder %s21, %s22
      %p31 = scmp.eq.s32.totalorder %s16, 0
      %p32 = por %p30, %p31
      %p33 = scmp.ne.s32.totalorder %s21, %s22
      %p34 = scmp.eq.s32.totalorder %s17, 1
      %p35 = por %p33, %p34
      %p37 = scmp.ne.s32.totalorder %s22, %s36
      %p38 = scmp.eq.s32.totalorder %s17, 0
      %p39 = por %p37, %p38
      %s40 = ssub.s32 %s11, %s18
      %p41 = scmp.eq.s32.totalorder %s40, 0
      %s43 = sadd.s32 %s42, 1
      %s44 = scalar_select %p41, %s42, %s43
      %p47 = pneg %p41
      %p48 = scmp.eq.s32.totalorder %s11, 1
      %p49 = por %p47, %p48
      %p50 = scmp.ne.s32.totalorder %s42, %s45
      %p51 = scmp.eq.s32.totalorder %s11, 0
      %p52 = por %p50, %p51
      %p53 = scmp.ne.s32.totalorder %s42, %s45
      %p54 = scmp.eq.s32.totalorder %s16, 1
      %p55 = por %p53, %p54
      %p56 = scmp.ne.s32.totalorder %s45, %s46
      %p57 = scmp.eq.s32.totalorder %s16, 0
      %p58 = por %p56, %p57
      %p59 = scmp.ne.s32.totalorder %s45, %s46
      %p60 = scmp.eq.s32.totalorder %s17, 1
      %p61 = por %p59, %p60
      %p63 = scmp.ne.s32.totalorder %s46, %s62
      %p64 = scmp.eq.s32.totalorder %s17, 0
      %p65 = por %p63, %p64
      %s66 = ssub.s32 %s11, %s18
      %p67 = scmp.eq.s32.totalorder %s66, 0
      %s69 = sadd.s32 %s68, 1
      %s70 = scalar_select %p67, %s68, %s69
      %p73 = pneg %p67
      %p74 = scmp.eq.s32.totalorder %s11, 1
      %p75 = por %p73, %p74
      %p76 = scmp.ne.s32.totalorder %s68, %s71
      %p77 = scmp.eq.s32.totalorder %s11, 0
      %p78 = por %p76, %p77
      %p79 = scmp.ne.s32.totalorder %s68, %s71
      %p80 = scmp.eq.s32.totalorder %s16, 1
      %p81 = por %p79, %p80
      %p82 = scmp.ne.s32.totalorder %s71, %s72
      %p83 = scmp.eq.s32.totalorder %s16, 0
      %p84 = por %p82, %p83
      %p85 = scmp.ne.s32.totalorder %s71, %s72
      %p86 = scmp.eq.s32.totalorder %s17, 1
      %p87 = por %p85, %p86
      %p89 = scmp.ne.s32.totalorder %s72, %s88
      %p90 = scmp.eq.s32.totalorder %s17, 0
      %p91 = por %p89, %p90
      %s92 = ssub.s32 %s11, %s18
      %p93 = scmp.eq.s32.totalorder %s92, 0
      %s95 = sadd.s32 %s94, 1
      %s96 = scalar_select %p93, %s94, %s95
      %p99 = pneg %p93
      %p100 = scmp.eq.s32.totalorder %s11, 1
      %p101 = por %p99, %p100
      %p102 = scmp.ne.s32.totalorder %s94, %s97
      %p103 = scmp.eq.s32.totalorder %s11, 0
      %p104 = por %p102, %p103
      %p105 = scmp.ne.s32.totalorder %s94, %s97
      %p106 = scmp.eq.s32.totalorder %s16, 1
      %p107 = por %p105, %p106
      %p108 = scmp.ne.s32.totalorder %s97, %s98
      %p109 = scmp.eq.s32.totalorder %s16, 0
      %p110 = por %p108, %p109
      %p111 = scmp.ne.s32.totalorder %s97, %s98
      %p112 = scmp.eq.s32.totalorder %s17, 1
      %p113 = por %p111, %p112
      %p115 = scmp.ne.s32.totalorder %s98, %s114
      %p116 = scmp.eq.s32.totalorder %s17, 0
      %p117 = por %p115, %p116
      %s118 = ssub.s32 %s11, %s18
      %p119 = scmp.eq.s32.totalorder %s118, 0
      %s121 = sadd.s32 %s120, 1
      %s122 = scalar_select %p119, %s120, %s121
      %p125 = pneg %p119
      %p126 = scmp.eq.s32.totalorder %s11, 1
      %p127 = por %p125, %p126
      %p128 = scmp.ne.s32.totalorder %s120, %s123
      %p129 = scmp.eq.s32.totalorder %s11, 0
      %p130 = por %p128, %p129
      %p131 = scmp.ne.s32.totalorder %s120, %s123
      %p132 = scmp.eq.s32.totalorder %s16, 1
      %p133 = por %p131, %p132
      %p134 = scmp.ne.s32.totalorder %s123, %s124
      %p135 = scmp.eq.s32.totalorder %s16, 0
      %p136 = por %p134, %p135
      %p137 = scmp.ne.s32.totalorder %s123, %s124
      %p138 = scmp.eq.s32.totalorder %s17, 1
      %p139 = por %p137, %p138
      %p141 = scmp.ne.s32.totalorder %s124, %s140
      %p142 = scmp.eq.s32.totalorder %s17, 0
      %p143 = por %p141, %p142
      %p144 = scmp.le.s32.totalorder 1, %s11
      %p145 = scmp.lt.s32.totalorder %s11, 3
      %p146 = pnand %p144, %p145
      %p147 = pneg %p146
      // Predicated region
      $region9: #{fine_matching_loss.1} parent=5 // pred_check
        _
      $region10: #{fine_matching_loss.1} parent=5 // pred_check_branch
        %149 = sbr.rel (%p146) target = $region12
      $region11: #{fine_matching_loss.1} parent=5 // pred_region
        %s150 = ssub.s32 %s11, 1
        // Predicated region
        $region13: #{fine_matching_loss.1} parent=11 // pred_check
          %p151 = pneg %p32
        $region14: #{fine_matching_loss.1} parent=11 // pred_check_branch
          %153 = sbr.rel (%p151) target = $region16
        $region15: #{fine_matching_loss.1} parent=11 // pred_region
          %s155 = ssub.s32 16, 16
          %156 = vsyncadd [#allocation3], %s155
          %s158 = sshll.u32 %s0, 4
          %s159 = int_to_ptr.vmem [resolvable:$true] %s158
          %161 = dma.vmem_to_smem %s159, 16, [#allocation2], [#allocation3]
        $region16: #{fine_matching_loss.1} parent=11 // pred_fallthru
          _
      $region12: #{fine_matching_loss.1} parent=5 // pred_fallthru
        _
      %p162 = scmp.lt.s32.totalorder %s11, 2
      // Predicated region
      $region17: #{fine_matching_loss.1} parent=5 // pred_check
        %p163 = pneg %p162
      $region18: #{fine_matching_loss.1} parent=5 // pred_check_branch
        %165 = sbr.rel (%p163) target = $region20
      $region19: #{fine_matching_loss.1} parent=5 // pred_region
        // Predicated region
        $region21: #{fine_matching_loss.1} parent=19 // pred_check
          %p166 = pneg %p52
        $region22: #{fine_matching_loss.1} parent=19 // pred_check_branch
          %168 = sbr.rel (%p166) target = $region24
        $region23: #{fine_matching_loss.1} parent=19 // pred_region
          %s169 = smul.u32 6, %s11
          %p170 = scmp.lt.s32.totalorder %s169, 11
          %s171 = scalar_select %p170, %s169, 11
          %s172 = smul.addr %s171, 4
          %s173 = smul.addr %s172, 8
          %s174 = scalar_lea.vmem %s1, %s173
          %s175 = smul.u32 6, %s11
        $region24: #{fine_matching_loss.1} parent=19 // pred_fallthru
          _
        // Predicated region
        $region25: #{fine_matching_loss.1} parent=19 // pred_check
          %p176 = pneg %p78
        $region26: #{fine_matching_loss.1} parent=19 // pred_check_branch
          %178 = sbr.rel (%p176) target = $region28
        $region27: #{fine_matching_loss.1} parent=19 // pred_region
          %s179 = smul.u32 6, %s11
          %p180 = scmp.lt.s32.totalorder %s179, 11
          %s181 = scalar_select %p180, %s179, 11
          %s182 = smul.addr %s181, 4
          %s183 = scalar_lea.vmem %s2, %s182
          %s184 = smul.u32 6, %s11
        $region28: #{fine_matching_loss.1} parent=19 // pred_fallthru
          _
        // Predicated region
        $region29: #{fine_matching_loss.1} parent=19 // pred_check
          %p185 = pneg %p104
        $region30: #{fine_matching_loss.1} parent=19 // pred_check_branch
          %187 = sbr.rel (%p185) target = $region32
        $region31: #{fine_matching_loss.1} parent=19 // pred_region
          %s188 = smul.u32 6, %s11
          %p189 = scmp.lt.s32.totalorder %s188, 11
          %s190 = scalar_select %p189, %s188, 11
          %s191 = smul.addr %s190, 5
          %s192 = smul.addr %s191, 8
          %s193 = scalar_lea.vmem %s3, %s192
          %s194 = smul.u32 6, %s11
        $region32: #{fine_matching_loss.1} parent=19 // pred_fallthru
          _
      $region20: #{fine_matching_loss.1} parent=5 // pred_fallthru
        _
      %p195 = scmp.le.s32.totalorder 1, %s11
      %p196 = scmp.lt.s32.totalorder %s11, 3
      %p197 = pnand %p195, %p196
      %p198 = pneg %p197
      // Predicated region
      $region33: #{fine_matching_loss.1} parent=5 // pred_check
        _
      $region34: #{fine_matching_loss.1} parent=5 // pred_check_branch
        %200 = sbr.rel (%p197) target = $region36
      $region35: #{fine_matching_loss.1} parent=5 // pred_region
        %s201 = ssub.s32 %s11, 1
        // Predicated region
        $region37: #{fine_matching_loss.1} parent=35 // pred_check
          %p202 = pneg %p32
        $region38: #{fine_matching_loss.1} parent=35 // pred_check_branch
          %204 = sbr.rel (%p202) target = $region40
        $region39: #{fine_matching_loss.1} parent=35 // pred_region
          %205 = dma.done [#allocation3], 16
        $region40: #{fine_matching_loss.1} parent=35 // pred_fallthru
          _
        %206 = sfence
        %p207 = pneg %p32
        %p208 = pneg %p29
        %s209 = smul.u32 6, %s16
        %p210 = scmp.lt.s32.totalorder %s209, 11
        %s211 = scalar_select %p210, %s209, 11
        %s212 = smul.addr %s211, 4
        %s213 = smul.addr %s212, 8
        %s214 = scalar_lea.vmem %s1, %s213
        %p215 = pneg %p58
        %p216 = pneg %p55
        %s217 = smul.u32 6, %s16
        %p218 = scmp.lt.s32.totalorder %s217, 11
        %s219 = scalar_select %p218, %s217, 11
        %s220 = smul.addr %s219, 4
        %s221 = scalar_lea.vmem %s2, %s220
        %p222 = pneg %p84
        %p223 = pneg %p81
        %s224 = smul.u32 6, %s16
        %p225 = scmp.lt.s32.totalorder %s224, 11
        %s226 = scalar_select %p225, %s224, 11
        %s227 = smul.addr %s226, 5
        %s228 = smul.addr %s227, 8
        %s229 = scalar_lea.vmem %s3, %s228
        %p230 = pneg %p110
        %p231 = pneg %p107
        %p232 = pneg %p136
        %p233 = pneg %p133
        %p234 = scmp.lt.s32.totalorder %s16, 1
        %s235 = scalar_select %p234, %s16, 1
        %s236 = smul.addr %s235, 8
        %s237 = scalar_lea.vmem %s4, %s236
        %s238 = smul.u32 6, %s16
        %p239 = scmp.lt.s32.totalorder %s238, 11
        %s240 = scalar_select %p239, %s238, 11
        %s241 = smul.addr %s240, 4
        %s242 = smul.addr %s241, 8
        %s243 = scalar_lea.vmem %s1, %s242
        %s244 = smul.u32 6, %s16
        %s245 = smul.u32 6, %s16
        %p246 = scmp.lt.s32.totalorder %s245, 11
        %s247 = scalar_select %p246, %s245, 11
        %s248 = smul.addr %s247, 4
        %s249 = scalar_lea.vmem %s2, %s248
        %s250 = smul.u32 6, %s16
        %s251 = smul.u32 6, %s16
        %p252 = scmp.lt.s32.totalorder %s251, 11
        %s253 = scalar_select %p252, %s251, 11
        %s254 = smul.addr %s253, 5
        %s255 = smul.addr %s254, 8
        %s256 = scalar_lea.vmem %s3, %s255
        %s257 = smul.u32 6, %s16
        %p258 = scmp.lt.s32.totalorder %s16, 1
        %s259 = scalar_select %p258, %s16, 1
        %s260 = smul.addr %s259, 8
        %s261 = scalar_lea.vmem %s4, %s260
        %v262 = vld [vmem:[%s243] sm:$0xff]
        %v263 = vld [vmem:[%s243 + $0x8] sm:$0xff]
        %v264 = vld [vmem:[%s243 + $0x10] sm:$0xff]
        %v265 = vld [vmem:[%s243 + $0x18] sm:$0xff]
        %v266 = vld [vmem:[%s243 + $0x20] sm:$0xff]
        %v267 = vld [vmem:[%s243 + $0x28] sm:$0xff]
        %v268 = vld [vmem:[%s243 + $0x30] sm:$0xff]
        %v269 = vld [vmem:[%s243 + $0x38] sm:$0xff]
        %v270 = vld [vmem:[%s243 + $0x40] sm:$0xff]
        %v271 = vld [vmem:[%s243 + $0x48] sm:$0xff]
        %v272 = vld [vmem:[%s243 + $0x50] sm:$0xff]
        %v273 = vld [vmem:[%s243 + $0x58] sm:$0xff]
        %v274 = vld [vmem:[%s243 + $0x60] sm:$0xff]
        %v275 = vld [vmem:[%s243 + $0x68] sm:$0xff]
        %v276 = vld [vmem:[%s243 + $0x70] sm:$0xff]
        %v277 = vld [vmem:[%s243 + $0x78] sm:$0xff]
        %v278 = vld [vmem:[%s243 + $0x80] sm:$0xff]
        %v279 = vld [vmem:[%s243 + $0x88] sm:$0xff]
        %v280 = vld [vmem:[%s243 + $0x90] sm:$0xff]
        %v281 = vld [vmem:[%s243 + $0x98] sm:$0xff]
        %v282 = vld [vmem:[%s243 + $0xa0] sm:$0xff]
        %v283 = vld [vmem:[%s243 + $0xa8] sm:$0xff]
        %v284 = vld [vmem:[%s243 + $0xb0] sm:$0xff]
        %v285 = vld [vmem:[%s243 + $0xb8] sm:$0xff]
        %vm286 = vcmp.gt.f32.partialorder %v262, 0.5
        %vm287 = vcmp.gt.f32.partialorder %v263, 0.5
        %vm288 = vcmp.gt.f32.partialorder %v264, 0.5
        %vm289 = vcmp.gt.f32.partialorder %v265, 0.5
        %vm290 = vcmp.gt.f32.partialorder %v266, 0.5
        %vm291 = vcmp.gt.f32.partialorder %v267, 0.5
        %vm292 = vcmp.gt.f32.partialorder %v268, 0.5
        %vm293 = vcmp.gt.f32.partialorder %v269, 0.5
        %vm294 = vcmp.gt.f32.partialorder %v270, 0.5
        %vm295 = vcmp.gt.f32.partialorder %v271, 0.5
        %vm296 = vcmp.gt.f32.partialorder %v272, 0.5
        %vm297 = vcmp.gt.f32.partialorder %v273, 0.5
        %vm298 = vcmp.gt.f32.partialorder %v274, 0.5
        %vm299 = vcmp.gt.f32.partialorder %v275, 0.5
        %vm300 = vcmp.gt.f32.partialorder %v276, 0.5
        %vm301 = vcmp.gt.f32.partialorder %v277, 0.5
        %vm302 = vcmp.gt.f32.partialorder %v278, 0.5
        %vm303 = vcmp.gt.f32.partialorder %v279, 0.5
        %vm304 = vcmp.gt.f32.partialorder %v280, 0.5
        %vm305 = vcmp.gt.f32.partialorder %v281, 0.5
        %vm306 = vcmp.gt.f32.partialorder %v282, 0.5
        %vm307 = vcmp.gt.f32.partialorder %v283, 0.5
        %vm308 = vcmp.gt.f32.partialorder %v284, 0.5
        %vm309 = vcmp.gt.f32.partialorder %v285, 0.5
        %v310 = vsel %vm286, 1.0, 0.0
        %v311 = vsel %vm287, 1.0, 0.0
        %v312 = vsel %vm288, 1.0, 0.0
        %v313 = vsel %vm289, 1.0, 0.0
        %v314 = vsel %vm290, 1.0, 0.0
        %v315 = vsel %vm291, 1.0, 0.0
        %v316 = vsel %vm292, 1.0, 0.0
        %v317 = vsel %vm293, 1.0, 0.0
        %v318 = vsel %vm294, 1.0, 0.0
        %v319 = vsel %vm295, 1.0, 0.0
        %v320 = vsel %vm296, 1.0, 0.0
        %v321 = vsel %vm297, 1.0, 0.0
        %v322 = vsel %vm298, 1.0, 0.0
        %v323 = vsel %vm299, 1.0, 0.0
        %v324 = vsel %vm300, 1.0, 0.0
        %v325 = vsel %vm301, 1.0, 0.0
        %v326 = vsel %vm302, 1.0, 0.0
        %v327 = vsel %vm303, 1.0, 0.0
        %v328 = vsel %vm304, 1.0, 0.0
        %v329 = vsel %vm305, 1.0, 0.0
        %v330 = vsel %vm306, 1.0, 0.0
        %v331 = vsel %vm307, 1.0, 0.0
        %v332 = vsel %vm308, 1.0, 0.0
        %v333 = vsel %vm309, 1.0, 0.0
        %v334 = vld [vmem:[%s249 + $0x3] sm:$0x1]
        %v335 = vld [vmem:[%s249 + $0x7] sm:$0x1]
        %v336 = vld [vmem:[%s249 + $0xb] sm:$0x1]
        %v337 = vld [vmem:[%s249 + $0xf] sm:$0x1]
        %v338 = vld [vmem:[%s249 + $0x13] sm:$0x1]
        %v339 = vld [vmem:[%s249 + $0x17] sm:$0x1]
        %vm340 = vcmp.gt.f32.partialorder %v334, 0.5
        %vm341 = vcmp.gt.f32.partialorder %v335, 0.5
        %vm342 = vcmp.gt.f32.partialorder %v336, 0.5
        %vm343 = vcmp.gt.f32.partialorder %v337, 0.5
        %vm344 = vcmp.gt.f32.partialorder %v338, 0.5
        %vm345 = vcmp.gt.f32.partialorder %v339, 0.5
        %v346 = vsel %vm340, 1.0, 0.0
        %v347 = vsel %vm341, 1.0, 0.0
        %v348 = vsel %vm342, 1.0, 0.0
        %v349 = vsel %vm343, 1.0, 0.0
        %v350 = vsel %vm344, 1.0, 0.0
        %v351 = vsel %vm345, 1.0, 0.0
        %v352 = vld [vmem:[%s249] sm:$0x1]
        %v353 = vld [vmem:[%s249 + $0x4] sm:$0x1]
        %v354 = vld [vmem:[%s249 + $0x8] sm:$0x1]
        %v355 = vld [vmem:[%s249 + $0xc] sm:$0x1]
        %v356 = vld [vmem:[%s249 + $0x10] sm:$0x1]
        %v357 = vld [vmem:[%s249 + $0x14] sm:$0x1]
        %v358 = vld [vmem:[%s249 + $0x1] sm:$0x1]
        %v359 = vld [vmem:[%s249 + $0x5] sm:$0x1]
        %v360 = vld [vmem:[%s249 + $0x9] sm:$0x1]
        %v361 = vld [vmem:[%s249 + $0xd] sm:$0x1]
        %v362 = vld [vmem:[%s249 + $0x11] sm:$0x1]
        %v363 = vld [vmem:[%s249 + $0x15] sm:$0x1]
        %v364 = vld [vmem:[%s249 + $0x2] sm:$0x1]
        %v365 = vld [vmem:[%s249 + $0x6] sm:$0x1]
        %v366 = vld [vmem:[%s249 + $0xa] sm:$0x1]
        %v367 = vld [vmem:[%s249 + $0xe] sm:$0x1]
        %v368 = vld [vmem:[%s249 + $0x12] sm:$0x1]
        %v369 = vld [vmem:[%s249 + $0x16] sm:$0x1]
        %s370 = sld [smem:[#allocation2]]
        %v371 = vstv %s370
        %v372 = vmul.f32 %v371, %v352
        %v373 = vmul.f32 %v371, %v353
        %v374 = vmul.f32 %v371, %v354
        %v375 = vmul.f32 %v371, %v355
        %v376 = vmul.f32 %v371, %v356
        %v377 = vmul.f32 %v371, %v357
        %s378 = sld [smem:[#allocation2 + $0x1]]
        %v379 = vstv %s378
        %v380 = vmul.f32 %v379, %v358
        %v381 = vmul.f32 %v379, %v359
        %v382 = vmul.f32 %v379, %v360
        %v383 = vmul.f32 %v379, %v361
        %v384 = vmul.f32 %v379, %v362
        %v385 = vmul.f32 %v379, %v363
        %v386 = vadd.f32 %v372, %v380
        %v387 = vadd.f32 %v373, %v381
        %v388 = vadd.f32 %v374, %v382
        %v389 = vadd.f32 %v375, %v383
        %v390 = vadd.f32 %v376, %v384
        %v391 = vadd.f32 %v377, %v385
        %s392 = sld [smem:[#allocation2 + $0x2]]
        %v393 = vstv %s392
        %v394 = vmul.f32 %v393, %v364
        %v395 = vmul.f32 %v393, %v365
        %v396 = vmul.f32 %v393, %v366
        %v397 = vmul.f32 %v393, %v367
        %v398 = vmul.f32 %v393, %v368
        %v399 = vmul.f32 %v393, %v369
        %v400 = vadd.f32 %v386, %v394
        %v401 = vadd.f32 %v387, %v395
        %v402 = vadd.f32 %v388, %v396
        %v403 = vadd.f32 %v389, %v397
        %v404 = vadd.f32 %v390, %v398
        %v405 = vadd.f32 %v391, %v399
        %s406 = sld [smem:[#allocation2 + $0x9]]
        %v407 = vstv %s406
        %v408 = vadd.f32 %v400, %v407
        %v409 = vadd.f32 %v401, %v407
        %v410 = vadd.f32 %v402, %v407
        %v411 = vadd.f32 %v403, %v407
        %v412 = vadd.f32 %v404, %v407
        %v413 = vadd.f32 %v405, %v407
        %415 = vset.pattern.permute.xlu0 0
        %416 = vperm.xlu0 %415, %v262
        %v417 = vpop.permute.xlu0 %416
        %420 = vset.pattern.permute.xlu0 0
        %421 = vperm.xlu0 %420, %v263
        %v422 = vpop.permute.xlu0 %421
        %425 = vset.pattern.permute.xlu0 0
        %426 = vperm.xlu0 %425, %v264
        %v427 = vpop.permute.xlu0 %426
        %430 = vset.pattern.permute.xlu0 0
        %431 = vperm.xlu0 %430, %v265
        %v432 = vpop.permute.xlu0 %431
        %435 = vset.pattern.permute.xlu0 0
        %436 = vperm.xlu0 %435, %v266
        %v437 = vpop.permute.xlu0 %436
        %440 = vset.pattern.permute.xlu0 0
        %441 = vperm.xlu0 %440, %v267
        %v442 = vpop.permute.xlu0 %441
        %445 = vset.pattern.permute.xlu0 0
        %446 = vperm.xlu0 %445, %v268
        %v447 = vpop.permute.xlu0 %446
        %450 = vset.pattern.permute.xlu0 0
        %451 = vperm.xlu0 %450, %v269
        %v452 = vpop.permute.xlu0 %451
        %455 = vset.pattern.permute.xlu0 0
        %456 = vperm.xlu0 %455, %v270
        %v457 = vpop.permute.xlu0 %456
        %460 = vset.pattern.permute.xlu0 0
        %461 = vperm.xlu0 %460, %v271
        %v462 = vpop.permute.xlu0 %461
        %465 = vset.pattern.permute.xlu0 0
        %466 = vperm.xlu0 %465, %v272
        %v467 = vpop.permute.xlu0 %466
        %470 = vset.pattern.permute.xlu0 0
        %471 = vperm.xlu0 %470, %v273
        %v472 = vpop.permute.xlu0 %471
        %475 = vset.pattern.permute.xlu0 0
        %476 = vperm.xlu0 %475, %v274
        %v477 = vpop.permute.xlu0 %476
        %480 = vset.pattern.permute.xlu0 0
        %481 = vperm.xlu0 %480, %v275
        %v482 = vpop.permute.xlu0 %481
        %485 = vset.pattern.permute.xlu0 0
        %486 = vperm.xlu0 %485, %v276
        %v487 = vpop.permute.xlu0 %486
        %490 = vset.pattern.permute.xlu0 0
        %491 = vperm.xlu0 %490, %v277
        %v492 = vpop.permute.xlu0 %491
        %495 = vset.pattern.permute.xlu0 0
        %496 = vperm.xlu0 %495, %v278
        %v497 = vpop.permute.xlu0 %496
        %500 = vset.pattern.permute.xlu0 0
        %501 = vperm.xlu0 %500, %v279
        %v502 = vpop.permute.xlu0 %501
        %505 = vset.pattern.permute.xlu0 0
        %506 = vperm.xlu0 %505, %v280
        %v507 = vpop.permute.xlu0 %506
        %510 = vset.pattern.permute.xlu0 0
        %511 = vperm.xlu0 %510, %v281
        %v512 = vpop.permute.xlu0 %511
        %515 = vset.pattern.permute.xlu0 0
        %516 = vperm.xlu0 %515, %v282
        %v517 = vpop.permute.xlu0 %516
        %520 = vset.pattern.permute.xlu0 0
        %521 = vperm.xlu0 %520, %v283
        %v522 = vpop.permute.xlu0 %521
        %525 = vset.pattern.permute.xlu0 0
        %526 = vperm.xlu0 %525, %v284
        %v527 = vpop.permute.xlu0 %526
        %530 = vset.pattern.permute.xlu0 0
        %531 = vperm.xlu0 %530, %v285
        %v532 = vpop.permute.xlu0 %531
        %v534 = vlaneseq
        %v535 = vshrl.u32 %v534, 7
        %v536 = vsub.s32 0, %v535
        %v537 = vrot.slane %v408, %v536
        %v538 = vlaneseq
        %v539 = vshrl.u32 %v538, 7
        %v540 = vsub.s32 0, %v539
        %v541 = vrot.slane %v409, %v540
        %v542 = vlaneseq
        %v543 = vshrl.u32 %v542, 7
        %v544 = vsub.s32 0, %v543
        %v545 = vrot.slane %v410, %v544
        %v546 = vlaneseq
        %v547 = vshrl.u32 %v546, 7
        %v548 = vsub.s32 0, %v547
        %v549 = vrot.slane %v411, %v548
        %v550 = vlaneseq
        %v551 = vshrl.u32 %v550, 7
        %v552 = vsub.s32 0, %v551
        %v553 = vrot.slane %v412, %v552
        %v554 = vlaneseq
        %v555 = vshrl.u32 %v554, 7
        %v556 = vsub.s32 0, %v555
        %v557 = vrot.slane %v413, %v556
        %v558 = vsub.f32 %v417, %v537
        %v559 = vsub.f32 %v422, %v537
        %v560 = vsub.f32 %v427, %v537
        %v561 = vsub.f32 %v432, %v537
        %v562 = vsub.f32 %v437, %v541
        %v563 = vsub.f32 %v442, %v541
        %v564 = vsub.f32 %v447, %v541
        %v565 = vsub.f32 %v452, %v541
        %v566 = vsub.f32 %v457, %v545
        %v567 = vsub.f32 %v462, %v545
        %v568 = vsub.f32 %v467, %v545
        %v569 = vsub.f32 %v472, %v545
        %v570 = vsub.f32 %v477, %v549
        %v571 = vsub.f32 %v482, %v549
        %v572 = vsub.f32 %v487, %v549
        %v573 = vsub.f32 %v492, %v549
        %v574 = vsub.f32 %v497, %v553
        %v575 = vsub.f32 %v502, %v553
        %v576 = vsub.f32 %v507, %v553
        %v577 = vsub.f32 %v512, %v553
        %v578 = vsub.f32 %v517, %v557
        %v579 = vsub.f32 %v522, %v557
        %v580 = vsub.f32 %v527, %v557
        %v581 = vsub.f32 %v532, %v557
        %v582 = vmul.f32 %v558, %v558
        %v583 = vmul.f32 %v559, %v559
        %v584 = vmul.f32 %v560, %v560
        %v585 = vmul.f32 %v561, %v561
        %v586 = vmul.f32 %v562, %v562
        %v587 = vmul.f32 %v563, %v563
        %v588 = vmul.f32 %v564, %v564
        %v589 = vmul.f32 %v565, %v565
        %v590 = vmul.f32 %v566, %v566
        %v591 = vmul.f32 %v567, %v567
        %v592 = vmul.f32 %v568, %v568
        %v593 = vmul.f32 %v569, %v569
        %v594 = vmul.f32 %v570, %v570
        %v595 = vmul.f32 %v571, %v571
        %v596 = vmul.f32 %v572, %v572
        %v597 = vmul.f32 %v573, %v573
        %v598 = vmul.f32 %v574, %v574
        %v599 = vmul.f32 %v575, %v575
        %v600 = vmul.f32 %v576, %v576
        %v601 = vmul.f32 %v577, %v577
        %v602 = vmul.f32 %v578, %v578
        %v603 = vmul.f32 %v579, %v579
        %v604 = vmul.f32 %v580, %v580
        %v605 = vmul.f32 %v581, %v581
        %s606 = sld [smem:[#allocation2 + $0x3]]
        %v607 = vstv %s606
        %v608 = vmul.f32 %v607, %v352
        %v609 = vmul.f32 %v607, %v353
        %v610 = vmul.f32 %v607, %v354
        %v611 = vmul.f32 %v607, %v355
        %v612 = vmul.f32 %v607, %v356
        %v613 = vmul.f32 %v607, %v357
        %s614 = sld [smem:[#allocation2 + $0x4]]
        %v615 = vstv %s614
        %v616 = vmul.f32 %v615, %v358
        %v617 = vmul.f32 %v615, %v359
        %v618 = vmul.f32 %v615, %v360
        %v619 = vmul.f32 %v615, %v361
        %v620 = vmul.f32 %v615, %v362
        %v621 = vmul.f32 %v615, %v363
        %v622 = vadd.f32 %v608, %v616
        %v623 = vadd.f32 %v609, %v617
        %v624 = vadd.f32 %v610, %v618
        %v625 = vadd.f32 %v611, %v619
        %v626 = vadd.f32 %v612, %v620
        %v627 = vadd.f32 %v613, %v621
        %s628 = sld [smem:[#allocation2 + $0x5]]
        %v629 = vstv %s628
        %v630 = vmul.f32 %v629, %v364
        %v631 = vmul.f32 %v629, %v365
        %v632 = vmul.f32 %v629, %v366
        %v633 = vmul.f32 %v629, %v367
        %v634 = vmul.f32 %v629, %v368
        %v635 = vmul.f32 %v629, %v369
        %v636 = vadd.f32 %v622, %v630
        %v637 = vadd.f32 %v623, %v631
        %v638 = vadd.f32 %v624, %v632
        %v639 = vadd.f32 %v625, %v633
        %v640 = vadd.f32 %v626, %v634
        %v641 = vadd.f32 %v627, %v635
        %s642 = sld [smem:[#allocation2 + $0xa]]
        %v643 = vstv %s642
        %v644 = vadd.f32 %v636, %v643
        %v645 = vadd.f32 %v637, %v643
        %v646 = vadd.f32 %v638, %v643
        %v647 = vadd.f32 %v639, %v643
        %v648 = vadd.f32 %v640, %v643
        %v649 = vadd.f32 %v641, %v643
        %650 = vset.pattern.permute.xlu0 1
        %651 = vperm.xlu0 %650, %v262
        %v652 = vpop.permute.xlu0 %651
        %654 = vset.pattern.permute.xlu0 1
        %655 = vperm.xlu0 %654, %v263
        %v656 = vpop.permute.xlu0 %655
        %658 = vset.pattern.permute.xlu0 1
        %659 = vperm.xlu0 %658, %v264
        %v660 = vpop.permute.xlu0 %659
        %662 = vset.pattern.permute.xlu0 1
        %663 = vperm.xlu0 %662, %v265
        %v664 = vpop.permute.xlu0 %663
        %666 = vset.pattern.permute.xlu0 1
        %667 = vperm.xlu0 %666, %v266
        %v668 = vpop.permute.xlu0 %667
        %670 = vset.pattern.permute.xlu0 1
        %671 = vperm.xlu0 %670, %v267
        %v672 = vpop.permute.xlu0 %671
        %674 = vset.pattern.permute.xlu0 1
        %675 = vperm.xlu0 %674, %v268
        %v676 = vpop.permute.xlu0 %675
        %678 = vset.pattern.permute.xlu0 1
        %679 = vperm.xlu0 %678, %v269
        %v680 = vpop.permute.xlu0 %679
        %682 = vset.pattern.permute.xlu0 1
        %683 = vperm.xlu0 %682, %v270
        %v684 = vpop.permute.xlu0 %683
        %686 = vset.pattern.permute.xlu0 1
        %687 = vperm.xlu0 %686, %v271
        %v688 = vpop.permute.xlu0 %687
        %690 = vset.pattern.permute.xlu0 1
        %691 = vperm.xlu0 %690, %v272
        %v692 = vpop.permute.xlu0 %691
        %694 = vset.pattern.permute.xlu0 1
        %695 = vperm.xlu0 %694, %v273
        %v696 = vpop.permute.xlu0 %695
        %698 = vset.pattern.permute.xlu0 1
        %699 = vperm.xlu0 %698, %v274
        %v700 = vpop.permute.xlu0 %699
        %702 = vset.pattern.permute.xlu0 1
        %703 = vperm.xlu0 %702, %v275
        %v704 = vpop.permute.xlu0 %703
        %706 = vset.pattern.permute.xlu0 1
        %707 = vperm.xlu0 %706, %v276
        %v708 = vpop.permute.xlu0 %707
        %710 = vset.pattern.permute.xlu0 1
        %711 = vperm.xlu0 %710, %v277
        %v712 = vpop.permute.xlu0 %711
        %714 = vset.pattern.permute.xlu0 1
        %715 = vperm.xlu0 %714, %v278
        %v716 = vpop.permute.xlu0 %715
        %718 = vset.pattern.permute.xlu0 1
        %719 = vperm.xlu0 %718, %v279
        %v720 = vpop.permute.xlu0 %719
        %722 = vset.pattern.permute.xlu0 1
        %723 = vperm.xlu0 %722, %v280
        %v724 = vpop.permute.xlu0 %723
        %726 = vset.pattern.permute.xlu0 1
        %727 = vperm.xlu0 %726, %v281
        %v728 = vpop.permute.xlu0 %727
        %730 = vset.pattern.permute.xlu0 1
        %731 = vperm.xlu0 %730, %v282
        %v732 = vpop.permute.xlu0 %731
        %734 = vset.pattern.permute.xlu0 1
        %735 = vperm.xlu0 %734, %v283
        %v736 = vpop.permute.xlu0 %735
        %738 = vset.pattern.permute.xlu0 1
        %739 = vperm.xlu0 %738, %v284
        %v740 = vpop.permute.xlu0 %739
        %742 = vset.pattern.permute.xlu0 1
        %743 = vperm.xlu0 %742, %v285
        %v744 = vpop.permute.xlu0 %743
        %v746 = vlaneseq
        %v747 = vshrl.u32 %v746, 7
        %v748 = vsub.s32 0, %v747
        %v749 = vrot.slane %v644, %v748
        %v750 = vlaneseq
        %v751 = vshrl.u32 %v750, 7
        %v752 = vsub.s32 0, %v751
        %v753 = vrot.slane %v645, %v752
        %v754 = vlaneseq
        %v755 = vshrl.u32 %v754, 7
        %v756 = vsub.s32 0, %v755
        %v757 = vrot.slane %v646, %v756
        %v758 = vlaneseq
        %v759 = vshrl.u32 %v758, 7
        %v760 = vsub.s32 0, %v759
        %v761 = vrot.slane %v647, %v760
        %v762 = vlaneseq
        %v763 = vshrl.u32 %v762, 7
        %v764 = vsub.s32 0, %v763
        %v765 = vrot.slane %v648, %v764
        %v766 = vlaneseq
        %v767 = vshrl.u32 %v766, 7
        %v768 = vsub.s32 0, %v767
        %v769 = vrot.slane %v649, %v768
        %v770 = vsub.f32 %v652, %v749
        %v771 = vsub.f32 %v656, %v749
        %v772 = vsub.f32 %v660, %v749
        %v773 = vsub.f32 %v664, %v749
        %v774 = vsub.f32 %v668, %v753
        %v775 = vsub.f32 %v672, %v753
        %v776 = vsub.f32 %v676, %v753
        %v777 = vsub.f32 %v680, %v753
        %v778 = vsub.f32 %v684, %v757
        %v779 = vsub.f32 %v688, %v757
        %v780 = vsub.f32 %v692, %v757
        %v781 = vsub.f32 %v696, %v757
        %v782 = vsub.f32 %v700, %v761
        %v783 = vsub.f32 %v704, %v761
        %v784 = vsub.f32 %v708, %v761
        %v785 = vsub.f32 %v712, %v761
        %v786 = vsub.f32 %v716, %v765
        %v787 = vsub.f32 %v720, %v765
        %v788 = vsub.f32 %v724, %v765
        %v789 = vsub.f32 %v728, %v765
        %v790 = vsub.f32 %v732, %v769
        %v791 = vsub.f32 %v736, %v769
        %v792 = vsub.f32 %v740, %v769
        %v793 = vsub.f32 %v744, %v769
        %v794 = vmul.f32 %v770, %v770
        %v795 = vmul.f32 %v771, %v771
        %v796 = vmul.f32 %v772, %v772
        %v797 = vmul.f32 %v773, %v773
        %v798 = vmul.f32 %v774, %v774
        %v799 = vmul.f32 %v775, %v775
        %v800 = vmul.f32 %v776, %v776
        %v801 = vmul.f32 %v777, %v777
        %v802 = vmul.f32 %v778, %v778
        %v803 = vmul.f32 %v779, %v779
        %v804 = vmul.f32 %v780, %v780
        %v805 = vmul.f32 %v781, %v781
        %v806 = vmul.f32 %v782, %v782
        %v807 = vmul.f32 %v783, %v783
        %v808 = vmul.f32 %v784, %v784
        %v809 = vmul.f32 %v785, %v785
        %v810 = vmul.f32 %v786, %v786
        %v811 = vmul.f32 %v787, %v787
        %v812 = vmul.f32 %v788, %v788
        %v813 = vmul.f32 %v789, %v789
        %v814 = vmul.f32 %v790, %v790
        %v815 = vmul.f32 %v791, %v791
        %v816 = vmul.f32 %v792, %v792
        %v817 = vmul.f32 %v793, %v793
        %v818 = vadd.f32 %v582, %v794
        %v819 = vadd.f32 %v583, %v795
        %v820 = vadd.f32 %v584, %v796
        %v821 = vadd.f32 %v585, %v797
        %v822 = vadd.f32 %v586, %v798
        %v823 = vadd.f32 %v587, %v799
        %v824 = vadd.f32 %v588, %v800
        %v825 = vadd.f32 %v589, %v801
        %v826 = vadd.f32 %v590, %v802
        %v827 = vadd.f32 %v591, %v803
        %v828 = vadd.f32 %v592, %v804
        %v829 = vadd.f32 %v593, %v805
        %v830 = vadd.f32 %v594, %v806
        %v831 = vadd.f32 %v595, %v807
        %v832 = vadd.f32 %v596, %v808
        %v833 = vadd.f32 %v597, %v809
        %v834 = vadd.f32 %v598, %v810
        %v835 = vadd.f32 %v599, %v811
        %v836 = vadd.f32 %v600, %v812
        %v837 = vadd.f32 %v601, %v813
        %v838 = vadd.f32 %v602, %v814
        %v839 = vadd.f32 %v603, %v815
        %v840 = vadd.f32 %v604, %v816
        %v841 = vadd.f32 %v605, %v817
        %s842 = sld [smem:[#allocation2 + $0x6]]
        %v843 = vstv %s842
        %v844 = vmul.f32 %v843, %v352
        %v845 = vmul.f32 %v843, %v353
        %v846 = vmul.f32 %v843, %v354
        %v847 = vmul.f32 %v843, %v355
        %v848 = vmul.f32 %v843, %v356
        %v849 = vmul.f32 %v843, %v357
        %s850 = sld [smem:[#allocation2 + $0x7]]
        %v851 = vstv %s850
        %v852 = vmul.f32 %v851, %v358
        %v853 = vmul.f32 %v851, %v359
        %v854 = vmul.f32 %v851, %v360
        %v855 = vmul.f32 %v851, %v361
        %v856 = vmul.f32 %v851, %v362
        %v857 = vmul.f32 %v851, %v363
        %v858 = vadd.f32 %v844, %v852
        %v859 = vadd.f32 %v845, %v853
        %v860 = vadd.f32 %v846, %v854
        %v861 = vadd.f32 %v847, %v855
        %v862 = vadd.f32 %v848, %v856
        %v863 = vadd.f32 %v849, %v857
        %s864 = sld [smem:[#allocation2 + $0x8]]
        %v865 = vstv %s864
        %v866 = vmul.f32 %v865, %v364
        %v867 = vmul.f32 %v865, %v365
        %v868 = vmul.f32 %v865, %v366
        %v869 = vmul.f32 %v865, %v367
        %v870 = vmul.f32 %v865, %v368
        %v871 = vmul.f32 %v865, %v369
        %v872 = vadd.f32 %v858, %v866
        %v873 = vadd.f32 %v859, %v867
        %v874 = vadd.f32 %v860, %v868
        %v875 = vadd.f32 %v861, %v869
        %v876 = vadd.f32 %v862, %v870
        %v877 = vadd.f32 %v863, %v871
        %s878 = sld [smem:[#allocation2 + $0xb]]
        %v879 = vstv %s878
        %v880 = vadd.f32 %v872, %v879
        %v881 = vadd.f32 %v873, %v879
        %v882 = vadd.f32 %v874, %v879
        %v883 = vadd.f32 %v875, %v879
        %v884 = vadd.f32 %v876, %v879
        %v885 = vadd.f32 %v877, %v879
        %886 = vset.pattern.permute.xlu0 2
        %887 = vperm.xlu0 %886, %v262
        %v888 = vpop.permute.xlu0 %887
        %890 = vset.pattern.permute.xlu0 2
        %891 = vperm.xlu0 %890, %v263
        %v892 = vpop.permute.xlu0 %891
        %894 = vset.pattern.permute.xlu0 2
        %895 = vperm.xlu0 %894, %v264
        %v896 = vpop.permute.xlu0 %895
        %898 = vset.pattern.permute.xlu0 2
        %899 = vperm.xlu0 %898, %v265
        %v900 = vpop.permute.xlu0 %899
        %902 = vset.pattern.permute.xlu0 2
        %903 = vperm.xlu0 %902, %v266
        %v904 = vpop.permute.xlu0 %903
        %906 = vset.pattern.permute.xlu0 2
        %907 = vperm.xlu0 %906, %v267
        %v908 = vpop.permute.xlu0 %907
        %910 = vset.pattern.permute.xlu0 2
        %911 = vperm.xlu0 %910, %v268
        %v912 = vpop.permute.xlu0 %911
        %914 = vset.pattern.permute.xlu0 2
        %915 = vperm.xlu0 %914, %v269
        %v916 = vpop.permute.xlu0 %915
        %918 = vset.pattern.permute.xlu0 2
        %919 = vperm.xlu0 %918, %v270
        %v920 = vpop.permute.xlu0 %919
        %922 = vset.pattern.permute.xlu0 2
        %923 = vperm.xlu0 %922, %v271
        %v924 = vpop.permute.xlu0 %923
        %926 = vset.pattern.permute.xlu0 2
        %927 = vperm.xlu0 %926, %v272
        %v928 = vpop.permute.xlu0 %927
        %930 = vset.pattern.permute.xlu0 2
        %931 = vperm.xlu0 %930, %v273
        %v932 = vpop.permute.xlu0 %931
        %934 = vset.pattern.permute.xlu0 2
        %935 = vperm.xlu0 %934, %v274
        %v936 = vpop.permute.xlu0 %935
        %938 = vset.pattern.permute.xlu0 2
        %939 = vperm.xlu0 %938, %v275
        %v940 = vpop.permute.xlu0 %939
        %942 = vset.pattern.permute.xlu0 2
        %943 = vperm.xlu0 %942, %v276
        %v944 = vpop.permute.xlu0 %943
        %946 = vset.pattern.permute.xlu0 2
        %947 = vperm.xlu0 %946, %v277
        %v948 = vpop.permute.xlu0 %947
        %950 = vset.pattern.permute.xlu0 2
        %951 = vperm.xlu0 %950, %v278
        %v952 = vpop.permute.xlu0 %951
        %954 = vset.pattern.permute.xlu0 2
        %955 = vperm.xlu0 %954, %v279
        %v956 = vpop.permute.xlu0 %955
        %958 = vset.pattern.permute.xlu0 2
        %959 = vperm.xlu0 %958, %v280
        %v960 = vpop.permute.xlu0 %959
        %962 = vset.pattern.permute.xlu0 2
        %963 = vperm.xlu0 %962, %v281
        %v964 = vpop.permute.xlu0 %963
        %966 = vset.pattern.permute.xlu0 2
        %967 = vperm.xlu0 %966, %v282
        %v968 = vpop.permute.xlu0 %967
        %970 = vset.pattern.permute.xlu0 2
        %971 = vperm.xlu0 %970, %v283
        %v972 = vpop.permute.xlu0 %971
        %974 = vset.pattern.permute.xlu0 2
        %975 = vperm.xlu0 %974, %v284
        %v976 = vpop.permute.xlu0 %975
        %978 = vset.pattern.permute.xlu0 2
        %979 = vperm.xlu0 %978, %v285
        %v980 = vpop.permute.xlu0 %979
        %v982 = vlaneseq
        %v983 = vshrl.u32 %v982, 7
        %v984 = vsub.s32 0, %v983
        %v985 = vrot.slane %v880, %v984
        %v986 = vlaneseq
        %v987 = vshrl.u32 %v986, 7
        %v988 = vsub.s32 0, %v987
        %v989 = vrot.slane %v881, %v988
        %v990 = vlaneseq
        %v991 = vshrl.u32 %v990, 7
        %v992 = vsub.s32 0, %v991
        %v993 = vrot.slane %v882, %v992
        %v994 = vlaneseq
        %v995 = vshrl.u32 %v994, 7
        %v996 = vsub.s32 0, %v995
        %v997 = vrot.slane %v883, %v996
        %v998 = vlaneseq
        %v999 = vshrl.u32 %v998, 7
        %v1000 = vsub.s32 0, %v999
        %v1001 = vrot.slane %v884, %v1000
        %v1002 = vlaneseq
        %v1003 = vshrl.u32 %v1002, 7
        %v1004 = vsub.s32 0, %v1003
        %v1005 = vrot.slane %v885, %v1004
        %v1006 = vsub.f32 %v888, %v985
        %v1007 = vsub.f32 %v892, %v985
        %v1008 = vsub.f32 %v896, %v985
        %v1009 = vsub.f32 %v900, %v985
        %v1010 = vsub.f32 %v904, %v989
        %v1011 = vsub.f32 %v908, %v989
        %v1012 = vsub.f32 %v912, %v989
        %v1013 = vsub.f32 %v916, %v989
        %v1014 = vsub.f32 %v920, %v993
        %v1015 = vsub.f32 %v924, %v993
        %v1016 = vsub.f32 %v928, %v993
        %v1017 = vsub.f32 %v932, %v993
        %v1018 = vsub.f32 %v936, %v997
        %v1019 = vsub.f32 %v940, %v997
        %v1020 = vsub.f32 %v944, %v997
        %v1021 = vsub.f32 %v948, %v997
        %v1022 = vsub.f32 %v952, %v1001
        %v1023 = vsub.f32 %v956, %v1001
        %v1024 = vsub.f32 %v960, %v1001
        %v1025 = vsub.f32 %v964, %v1001
        %v1026 = vsub.f32 %v968, %v1005
        %v1027 = vsub.f32 %v972, %v1005
        %v1028 = vsub.f32 %v976, %v1005
        %v1029 = vsub.f32 %v980, %v1005
        %v1030 = vmul.f32 %v1006, %v1006
        %v1031 = vmul.f32 %v1007, %v1007
        %v1032 = vmul.f32 %v1008, %v1008
        %v1033 = vmul.f32 %v1009, %v1009
        %v1034 = vmul.f32 %v1010, %v1010
        %v1035 = vmul.f32 %v1011, %v1011
        %v1036 = vmul.f32 %v1012, %v1012
        %v1037 = vmul.f32 %v1013, %v1013
        %v1038 = vmul.f32 %v1014, %v1014
        %v1039 = vmul.f32 %v1015, %v1015
        %v1040 = vmul.f32 %v1016, %v1016
        %v1041 = vmul.f32 %v1017, %v1017
        %v1042 = vmul.f32 %v1018, %v1018
        %v1043 = vmul.f32 %v1019, %v1019
        %v1044 = vmul.f32 %v1020, %v1020
        %v1045 = vmul.f32 %v1021, %v1021
        %v1046 = vmul.f32 %v1022, %v1022
        %v1047 = vmul.f32 %v1023, %v1023
        %v1048 = vmul.f32 %v1024, %v1024
        %v1049 = vmul.f32 %v1025, %v1025
        %v1050 = vmul.f32 %v1026, %v1026
        %v1051 = vmul.f32 %v1027, %v1027
        %v1052 = vmul.f32 %v1028, %v1028
        %v1053 = vmul.f32 %v1029, %v1029
        %v1054 = vadd.f32 %v818, %v1030
        %v1055 = vadd.f32 %v819, %v1031
        %v1056 = vadd.f32 %v820, %v1032
        %v1057 = vadd.f32 %v821, %v1033
        %v1058 = vadd.f32 %v822, %v1034
        %v1059 = vadd.f32 %v823, %v1035
        %v1060 = vadd.f32 %v824, %v1036
        %v1061 = vadd.f32 %v825, %v1037
        %v1062 = vadd.f32 %v826, %v1038
        %v1063 = vadd.f32 %v827, %v1039
        %v1064 = vadd.f32 %v828, %v1040
        %v1065 = vadd.f32 %v829, %v1041
        %v1066 = vadd.f32 %v830, %v1042
        %v1067 = vadd.f32 %v831, %v1043
        %v1068 = vadd.f32 %v832, %v1044
        %v1069 = vadd.f32 %v833, %v1045
        %v1070 = vadd.f32 %v834, %v1046
        %v1071 = vadd.f32 %v835, %v1047
        %v1072 = vadd.f32 %v836, %v1048
        %v1073 = vadd.f32 %v837, %v1049
        %v1074 = vadd.f32 %v838, %v1050
        %v1075 = vadd.f32 %v839, %v1051
        %v1076 = vadd.f32 %v840, %v1052
        %v1077 = vadd.f32 %v841, %v1053
        %vm1078 = vcmp.lt.f32.partialorder %v1054, 0.0025
        %vm1079 = vcmp.lt.f32.partialorder %v1055, 0.0025
        %vm1080 = vcmp.lt.f32.partialorder %v1056, 0.0025
        %vm1081 = vcmp.lt.f32.partialorder %v1057, 0.0025
        %vm1082 = vcmp.lt.f32.partialorder %v1058, 0.0025
        %vm1083 = vcmp.lt.f32.partialorder %v1059, 0.0025
        %vm1084 = vcmp.lt.f32.partialorder %v1060, 0.0025
        %vm1085 = vcmp.lt.f32.partialorder %v1061, 0.0025
        %vm1086 = vcmp.lt.f32.partialorder %v1062, 0.0025
        %vm1087 = vcmp.lt.f32.partialorder %v1063, 0.0025
        %vm1088 = vcmp.lt.f32.partialorder %v1064, 0.0025
        %vm1089 = vcmp.lt.f32.partialorder %v1065, 0.0025
        %vm1090 = vcmp.lt.f32.partialorder %v1066, 0.0025
        %vm1091 = vcmp.lt.f32.partialorder %v1067, 0.0025
        %vm1092 = vcmp.lt.f32.partialorder %v1068, 0.0025
        %vm1093 = vcmp.lt.f32.partialorder %v1069, 0.0025
        %vm1094 = vcmp.lt.f32.partialorder %v1070, 0.0025
        %vm1095 = vcmp.lt.f32.partialorder %v1071, 0.0025
        %vm1096 = vcmp.lt.f32.partialorder %v1072, 0.0025
        %vm1097 = vcmp.lt.f32.partialorder %v1073, 0.0025
        %vm1098 = vcmp.lt.f32.partialorder %v1074, 0.0025
        %vm1099 = vcmp.lt.f32.partialorder %v1075, 0.0025
        %vm1100 = vcmp.lt.f32.partialorder %v1076, 0.0025
        %vm1101 = vcmp.lt.f32.partialorder %v1077, 0.0025
        %v1102 = vsel %vm1078, 1.0, 0.0
        %v1103 = vsel %vm1079, 1.0, 0.0
        %v1104 = vsel %vm1080, 1.0, 0.0
        %v1105 = vsel %vm1081, 1.0, 0.0
        %v1106 = vsel %vm1082, 1.0, 0.0
        %v1107 = vsel %vm1083, 1.0, 0.0
        %v1108 = vsel %vm1084, 1.0, 0.0
        %v1109 = vsel %vm1085, 1.0, 0.0
        %v1110 = vsel %vm1086, 1.0, 0.0
        %v1111 = vsel %vm1087, 1.0, 0.0
        %v1112 = vsel %vm1088, 1.0, 0.0
        %v1113 = vsel %vm1089, 1.0, 0.0
        %v1114 = vsel %vm1090, 1.0, 0.0
        %v1115 = vsel %vm1091, 1.0, 0.0
        %v1116 = vsel %vm1092, 1.0, 0.0
        %v1117 = vsel %vm1093, 1.0, 0.0
        %v1118 = vsel %vm1094, 1.0, 0.0
        %v1119 = vsel %vm1095, 1.0, 0.0
        %v1120 = vsel %vm1096, 1.0, 0.0
        %v1121 = vsel %vm1097, 1.0, 0.0
        %v1122 = vsel %vm1098, 1.0, 0.0
        %v1123 = vsel %vm1099, 1.0, 0.0
        %v1124 = vsel %vm1100, 1.0, 0.0
        %v1125 = vsel %vm1101, 1.0, 0.0
        %1127 = vset.pattern.permute.xlu0 3
        %1128 = vperm.xlu0 %1127, %v310
        %v1129 = vpop.permute.xlu0 %1128
        %1132 = vset.pattern.permute.xlu0 3
        %1133 = vperm.xlu0 %1132, %v311
        %v1134 = vpop.permute.xlu0 %1133
        %1137 = vset.pattern.permute.xlu0 3
        %1138 = vperm.xlu0 %1137, %v312
        %v1139 = vpop.permute.xlu0 %1138
        %1142 = vset.pattern.permute.xlu0 3
        %1143 = vperm.xlu0 %1142, %v313
        %v1144 = vpop.permute.xlu0 %1143
        %1147 = vset.pattern.permute.xlu0 3
        %1148 = vperm.xlu0 %1147, %v314
        %v1149 = vpop.permute.xlu0 %1148
        %1152 = vset.pattern.permute.xlu0 3
        %1153 = vperm.xlu0 %1152, %v315
        %v1154 = vpop.permute.xlu0 %1153
        %1157 = vset.pattern.permute.xlu0 3
        %1158 = vperm.xlu0 %1157, %v316
        %v1159 = vpop.permute.xlu0 %1158
        %1162 = vset.pattern.permute.xlu0 3
        %1163 = vperm.xlu0 %1162, %v317
        %v1164 = vpop.permute.xlu0 %1163
        %1167 = vset.pattern.permute.xlu0 3
        %1168 = vperm.xlu0 %1167, %v318
        %v1169 = vpop.permute.xlu0 %1168
        %1172 = vset.pattern.permute.xlu0 3
        %1173 = vperm.xlu0 %1172, %v319
        %v1174 = vpop.permute.xlu0 %1173
        %1177 = vset.pattern.permute.xlu0 3
        %1178 = vperm.xlu0 %1177, %v320
        %v1179 = vpop.permute.xlu0 %1178
        %1182 = vset.pattern.permute.xlu0 3
        %1183 = vperm.xlu0 %1182, %v321
        %v1184 = vpop.permute.xlu0 %1183
        %1187 = vset.pattern.permute.xlu0 3
        %1188 = vperm.xlu0 %1187, %v322
        %v1189 = vpop.permute.xlu0 %1188
        %1192 = vset.pattern.permute.xlu0 3
        %1193 = vperm.xlu0 %1192, %v323
        %v1194 = vpop.permute.xlu0 %1193
        %1197 = vset.pattern.permute.xlu0 3
        %1198 = vperm.xlu0 %1197, %v324
        %v1199 = vpop.permute.xlu0 %1198
        %1202 = vset.pattern.permute.xlu0 3
        %1203 = vperm.xlu0 %1202, %v325
        %v1204 = vpop.permute.xlu0 %1203
        %1207 = vset.pattern.permute.xlu0 3
        %1208 = vperm.xlu0 %1207, %v326
        %v1209 = vpop.permute.xlu0 %1208
        %1212 = vset.pattern.permute.xlu0 3
        %1213 = vperm.xlu0 %1212, %v327
        %v1214 = vpop.permute.xlu0 %1213
        %1217 = vset.pattern.permute.xlu0 3
        %1218 = vperm.xlu0 %1217, %v328
        %v1219 = vpop.permute.xlu0 %1218
        %1222 = vset.pattern.permute.xlu0 3
        %1223 = vperm.xlu0 %1222, %v329
        %v1224 = vpop.permute.xlu0 %1223
        %1227 = vset.pattern.permute.xlu0 3
        %1228 = vperm.xlu0 %1227, %v330
        %v1229 = vpop.permute.xlu0 %1228
        %1232 = vset.pattern.permute.xlu0 3
        %1233 = vperm.xlu0 %1232, %v331
        %v1234 = vpop.permute.xlu0 %1233
        %1237 = vset.pattern.permute.xlu0 3
        %1238 = vperm.xlu0 %1237, %v332
        %v1239 = vpop.permute.xlu0 %1238
        %1242 = vset.pattern.permute.xlu0 3
        %1243 = vperm.xlu0 %1242, %v333
        %v1244 = vpop.permute.xlu0 %1243
        %v1246 = vmul.f32 %v1102, %v1129
        %v1247 = vmul.f32 %v1103, %v1134
        %v1248 = vmul.f32 %v1104, %v1139
        %v1249 = vmul.f32 %v1105, %v1144
        %v1250 = vmul.f32 %v1106, %v1149
        %v1251 = vmul.f32 %v1107, %v1154
        %v1252 = vmul.f32 %v1108, %v1159
        %v1253 = vmul.f32 %v1109, %v1164
        %v1254 = vmul.f32 %v1110, %v1169
        %v1255 = vmul.f32 %v1111, %v1174
        %v1256 = vmul.f32 %v1112, %v1179
        %v1257 = vmul.f32 %v1113, %v1184
        %v1258 = vmul.f32 %v1114, %v1189
        %v1259 = vmul.f32 %v1115, %v1194
        %v1260 = vmul.f32 %v1116, %v1199
        %v1261 = vmul.f32 %v1117, %v1204
        %v1262 = vmul.f32 %v1118, %v1209
        %v1263 = vmul.f32 %v1119, %v1214
        %v1264 = vmul.f32 %v1120, %v1219
        %v1265 = vmul.f32 %v1121, %v1224
        %v1266 = vmul.f32 %v1122, %v1229
        %v1267 = vmul.f32 %v1123, %v1234
        %v1268 = vmul.f32 %v1124, %v1239
        %v1269 = vmul.f32 %v1125, %v1244
        %v1270 = vlaneseq
        %v1271 = vshrl.u32 %v1270, 7
        %v1272 = vsub.s32 0, %v1271
        %v1273 = vrot.slane %v346, %v1272
        %v1274 = vlaneseq
        %v1275 = vshrl.u32 %v1274, 7
        %v1276 = vsub.s32 0, %v1275
        %v1277 = vrot.slane %v347, %v1276
        %v1278 = vlaneseq
        %v1279 = vshrl.u32 %v1278, 7
        %v1280 = vsub.s32 0, %v1279
        %v1281 = vrot.slane %v348, %v1280
        %v1282 = vlaneseq
        %v1283 = vshrl.u32 %v1282, 7
        %v1284 = vsub.s32 0, %v1283
        %v1285 = vrot.slane %v349, %v1284
        %v1286 = vlaneseq
        %v1287 = vshrl.u32 %v1286, 7
        %v1288 = vsub.s32 0, %v1287
        %v1289 = vrot.slane %v350, %v1288
        %v1290 = vlaneseq
        %v1291 = vshrl.u32 %v1290, 7
        %v1292 = vsub.s32 0, %v1291
        %v1293 = vrot.slane %v351, %v1292
        %v1294 = vmul.f32 %v1246, %v1273
        %v1295 = vmul.f32 %v1247, %v1273
        %v1296 = vmul.f32 %v1248, %v1273
        %v1297 = vmul.f32 %v1249, %v1273
        %v1298 = vmul.f32 %v1250, %v1277
        %v1299 = vmul.f32 %v1251, %v1277
        %v1300 = vmul.f32 %v1252, %v1277
        %v1301 = vmul.f32 %v1253, %v1277
        %v1302 = vmul.f32 %v1254, %v1281
        %v1303 = vmul.f32 %v1255, %v1281
        %v1304 = vmul.f32 %v1256, %v1281
        %v1305 = vmul.f32 %v1257, %v1281
        %v1306 = vmul.f32 %v1258, %v1285
        %v1307 = vmul.f32 %v1259, %v1285
        %v1308 = vmul.f32 %v1260, %v1285
        %v1309 = vmul.f32 %v1261, %v1285
        %v1310 = vmul.f32 %v1262, %v1289
        %v1311 = vmul.f32 %v1263, %v1289
        %v1312 = vmul.f32 %v1264, %v1289
        %v1313 = vmul.f32 %v1265, %v1289
        %v1314 = vmul.f32 %v1266, %v1293
        %v1315 = vmul.f32 %v1267, %v1293
        %v1316 = vmul.f32 %v1268, %v1293
        %v1317 = vmul.f32 %v1269, %v1293
        %vm1318 = vcmask 261120
        %v1319 = vsel %vm1318, %v1294, 0.0
        %1320 = vadd.xlane.f32.xlu0 %v1319
        %v1321 = vpop.xlane.xlu0 %1320
        %v1322 = vsel %vm1318, %v1295, 0.0
        %1323 = vadd.xlane.f32.xlu0 %v1322
        %v1324 = vpop.xlane.xlu0 %1323
        %v1325 = vsel %vm1318, %v1296, 0.0
        %1326 = vadd.xlane.f32.xlu0 %v1325
        %v1327 = vpop.xlane.xlu0 %1326
        %v1328 = vsel %vm1318, %v1297, 0.0
        %1329 = vadd.xlane.f32.xlu0 %v1328
        %v1330 = vpop.xlane.xlu0 %1329
        %v1331 = vsel %vm1318, %v1298, 0.0
        %1332 = vadd.xlane.f32.xlu0 %v1331
        %v1333 = vpop.xlane.xlu0 %1332
        %v1334 = vsel %vm1318, %v1299, 0.0
        %1335 = vadd.xlane.f32.xlu0 %v1334
        %v1336 = vpop.xlane.xlu0 %1335
        %v1337 = vsel %vm1318, %v1300, 0.0
        %1338 = vadd.xlane.f32.xlu0 %v1337
        %v1339 = vpop.xlane.xlu0 %1338
        %v1340 = vsel %vm1318, %v1301, 0.0
        %1341 = vadd.xlane.f32.xlu0 %v1340
        %v1342 = vpop.xlane.xlu0 %1341
        %v1343 = vsel %vm1318, %v1302, 0.0
        %1344 = vadd.xlane.f32.xlu0 %v1343
        %v1345 = vpop.xlane.xlu0 %1344
        %v1346 = vsel %vm1318, %v1303, 0.0
        %1347 = vadd.xlane.f32.xlu0 %v1346
        %v1348 = vpop.xlane.xlu0 %1347
        %v1349 = vsel %vm1318, %v1304, 0.0
        %1350 = vadd.xlane.f32.xlu0 %v1349
        %v1351 = vpop.xlane.xlu0 %1350
        %v1352 = vsel %vm1318, %v1305, 0.0
        %1353 = vadd.xlane.f32.xlu0 %v1352
        %v1354 = vpop.xlane.xlu0 %1353
        %v1355 = vsel %vm1318, %v1306, 0.0
        %1356 = vadd.xlane.f32.xlu0 %v1355
        %v1357 = vpop.xlane.xlu0 %1356
        %v1358 = vsel %vm1318, %v1307, 0.0
        %1359 = vadd.xlane.f32.xlu0 %v1358
        %v1360 = vpop.xlane.xlu0 %1359
        %v1361 = vsel %vm1318, %v1308, 0.0
        %1362 = vadd.xlane.f32.xlu0 %v1361
        %v1363 = vpop.xlane.xlu0 %1362
        %v1364 = vsel %vm1318, %v1309, 0.0
        %1365 = vadd.xlane.f32.xlu0 %v1364
        %v1366 = vpop.xlane.xlu0 %1365
        %v1367 = vsel %vm1318, %v1310, 0.0
        %1368 = vadd.xlane.f32.xlu0 %v1367
        %v1369 = vpop.xlane.xlu0 %1368
        %v1370 = vsel %vm1318, %v1311, 0.0
        %1371 = vadd.xlane.f32.xlu0 %v1370
        %v1372 = vpop.xlane.xlu0 %1371
        %v1373 = vsel %vm1318, %v1312, 0.0
        %1374 = vadd.xlane.f32.xlu0 %v1373
        %v1375 = vpop.xlane.xlu0 %1374
        %v1376 = vsel %vm1318, %v1313, 0.0
        %1377 = vadd.xlane.f32.xlu0 %v1376
        %v1378 = vpop.xlane.xlu0 %1377
        %v1379 = vsel %vm1318, %v1314, 0.0
        %1380 = vadd.xlane.f32.xlu0 %v1379
        %v1381 = vpop.xlane.xlu0 %1380
        %v1382 = vsel %vm1318, %v1315, 0.0
        %1383 = vadd.xlane.f32.xlu0 %v1382
        %v1384 = vpop.xlane.xlu0 %1383
        %v1385 = vsel %vm1318, %v1316, 0.0
        %1386 = vadd.xlane.f32.xlu0 %v1385
        %v1387 = vpop.xlane.xlu0 %1386
        %v1388 = vsel %vm1318, %v1317, 0.0
        %1389 = vadd.xlane.f32.xlu0 %v1388
        %v1390 = vpop.xlane.xlu0 %1389
        %v1391 = vadd.f32 %v1319, %v1322
        %v1392 = vadd.f32 %v1391, %v1325
        %v1393 = vadd.f32 %v1392, %v1328
        %v1394 = vrot.slane %v1393, 4
        %v1395 = vadd.f32 %v1393, %v1394
        %v1396 = vrot.slane %v1395, 2
        %v1397 = vadd.f32 %v1395, %v1396
        %v1398 = vrot.slane %v1397, 1
        %v1399 = vadd.f32 %v1397, %v1398
        %v1400 = vadd.f32 %v1331, %v1334
        %v1401 = vadd.f32 %v1400, %v1337
        %v1402 = vadd.f32 %v1401, %v1340
        %v1403 = vrot.slane %v1402, 4
        %v1404 = vadd.f32 %v1402, %v1403
        %v1405 = vrot.slane %v1404, 2
        %v1406 = vadd.f32 %v1404, %v1405
        %v1407 = vrot.slane %v1406, 1
        %v1408 = vadd.f32 %v1406, %v1407
        %v1409 = vadd.f32 %v1343, %v1346
        %v1410 = vadd.f32 %v1409, %v1349
        %v1411 = vadd.f32 %v1410, %v1352
        %v1412 = vrot.slane %v1411, 4
        %v1413 = vadd.f32 %v1411, %v1412
        %v1414 = vrot.slane %v1413, 2
        %v1415 = vadd.f32 %v1413, %v1414
        %v1416 = vrot.slane %v1415, 1
        %v1417 = vadd.f32 %v1415, %v1416
        %v1418 = vadd.f32 %v1355, %v1358
        %v1419 = vadd.f32 %v1418, %v1361
        %v1420 = vadd.f32 %v1419, %v1364
        %v1421 = vrot.slane %v1420, 4
        %v1422 = vadd.f32 %v1420, %v1421
        %v1423 = vrot.slane %v1422, 2
        %v1424 = vadd.f32 %v1422, %v1423
        %v1425 = vrot.slane %v1424, 1
        %v1426 = vadd.f32 %v1424, %v1425
        %v1427 = vadd.f32 %v1367, %v1370
        %v1428 = vadd.f32 %v1427, %v1373
        %v1429 = vadd.f32 %v1428, %v1376
        %v1430 = vrot.slane %v1429, 4
        %v1431 = vadd.f32 %v1429, %v1430
        %v1432 = vrot.slane %v1431, 2
        %v1433 = vadd.f32 %v1431, %v1432
        %v1434 = vrot.slane %v1433, 1
        %v1435 = vadd.f32 %v1433, %v1434
        %v1436 = vadd.f32 %v1379, %v1382
        %v1437 = vadd.f32 %v1436, %v1385
        %v1438 = vadd.f32 %v1437, %v1388
        %v1439 = vrot.slane %v1438, 4
        %v1440 = vadd.f32 %v1438, %v1439
        %v1441 = vrot.slane %v1440, 2
        %v1442 = vadd.f32 %v1440, %v1441
        %v1443 = vrot.slane %v1442, 1
        %v1444 = vadd.f32 %v1442, %v1443
        %vm1445 = vcmp.eq.f32.partialorder %v1321, 0.0
        %vm1446 = vcmp.eq.f32.partialorder %v1324, 0.0
        %vm1447 = vcmp.eq.f32.partialorder %v1327, 0.0
        %vm1448 = vcmp.eq.f32.partialorder %v1330, 0.0
        %vm1449 = vcmp.eq.f32.partialorder %v1333, 0.0
        %vm1450 = vcmp.eq.f32.partialorder %v1336, 0.0
        %vm1451 = vcmp.eq.f32.partialorder %v1339, 0.0
        %vm1452 = vcmp.eq.f32.partialorder %v1342, 0.0
        %vm1453 = vcmp.eq.f32.partialorder %v1345, 0.0
        %vm1454 = vcmp.eq.f32.partialorder %v1348, 0.0
        %vm1455 = vcmp.eq.f32.partialorder %v1351, 0.0
        %vm1456 = vcmp.eq.f32.partialorder %v1354, 0.0
        %vm1457 = vcmp.eq.f32.partialorder %v1357, 0.0
        %vm1458 = vcmp.eq.f32.partialorder %v1360, 0.0
        %vm1459 = vcmp.eq.f32.partialorder %v1363, 0.0
        %vm1460 = vcmp.eq.f32.partialorder %v1366, 0.0
        %vm1461 = vcmp.eq.f32.partialorder %v1369, 0.0
        %vm1462 = vcmp.eq.f32.partialorder %v1372, 0.0
        %vm1463 = vcmp.eq.f32.partialorder %v1375, 0.0
        %vm1464 = vcmp.eq.f32.partialorder %v1378, 0.0
        %vm1465 = vcmp.eq.f32.partialorder %v1381, 0.0
        %vm1466 = vcmp.eq.f32.partialorder %v1384, 0.0
        %vm1467 = vcmp.eq.f32.partialorder %v1387, 0.0
        %vm1468 = vcmp.eq.f32.partialorder %v1390, 0.0
        %v1469 = vsel %vm1445, 1.0, 0.0
        %v1470 = vsel %vm1446, 1.0, 0.0
        %v1471 = vsel %vm1447, 1.0, 0.0
        %v1472 = vsel %vm1448, 1.0, 0.0
        %v1473 = vsel %vm1449, 1.0, 0.0
        %v1474 = vsel %vm1450, 1.0, 0.0
        %v1475 = vsel %vm1451, 1.0, 0.0
        %v1476 = vsel %vm1452, 1.0, 0.0
        %v1477 = vsel %vm1453, 1.0, 0.0
        %v1478 = vsel %vm1454, 1.0, 0.0
        %v1479 = vsel %vm1455, 1.0, 0.0
        %v1480 = vsel %vm1456, 1.0, 0.0
        %v1481 = vsel %vm1457, 1.0, 0.0
        %v1482 = vsel %vm1458, 1.0, 0.0
        %v1483 = vsel %vm1459, 1.0, 0.0
        %v1484 = vsel %vm1460, 1.0, 0.0
        %v1485 = vsel %vm1461, 1.0, 0.0
        %v1486 = vsel %vm1462, 1.0, 0.0
        %v1487 = vsel %vm1463, 1.0, 0.0
        %v1488 = vsel %vm1464, 1.0, 0.0
        %v1489 = vsel %vm1465, 1.0, 0.0
        %v1490 = vsel %vm1466, 1.0, 0.0
        %v1491 = vsel %vm1467, 1.0, 0.0
        %v1492 = vsel %vm1468, 1.0, 0.0
        %v1493 = vmul.f32 %v1469, %v310
        %v1494 = vmul.f32 %v1470, %v311
        %v1495 = vmul.f32 %v1471, %v312
        %v1496 = vmul.f32 %v1472, %v313
        %v1497 = vmul.f32 %v1473, %v314
        %v1498 = vmul.f32 %v1474, %v315
        %v1499 = vmul.f32 %v1475, %v316
        %v1500 = vmul.f32 %v1476, %v317
        %v1501 = vmul.f32 %v1477, %v318
        %v1502 = vmul.f32 %v1478, %v319
        %v1503 = vmul.f32 %v1479, %v320
        %v1504 = vmul.f32 %v1480, %v321
        %v1505 = vmul.f32 %v1481, %v322
        %v1506 = vmul.f32 %v1482, %v323
        %v1507 = vmul.f32 %v1483, %v324
        %v1508 = vmul.f32 %v1484, %v325
        %v1509 = vmul.f32 %v1485, %v326
        %v1510 = vmul.f32 %v1486, %v327
        %v1511 = vmul.f32 %v1487, %v328
        %v1512 = vmul.f32 %v1488, %v329
        %v1513 = vmul.f32 %v1489, %v330
        %v1514 = vmul.f32 %v1490, %v331
        %v1515 = vmul.f32 %v1491, %v332
        %v1516 = vmul.f32 %v1492, %v333
        %vm1517 = vcmp.eq.f32.partialorder %v1399, 0.0
        %vm1518 = vcmp.eq.f32.partialorder %v1408, 0.0
        %vm1519 = vcmp.eq.f32.partialorder %v1417, 0.0
        %vm1520 = vcmp.eq.f32.partialorder %v1426, 0.0
        %vm1521 = vcmp.eq.f32.partialorder %v1435, 0.0
        %vm1522 = vcmp.eq.f32.partialorder %v1444, 0.0
        %v1523 = vsel %vm1517, 1.0, 0.0
        %v1524 = vsel %vm1518, 1.0, 0.0
        %v1525 = vsel %vm1519, 1.0, 0.0
        %v1526 = vsel %vm1520, 1.0, 0.0
        %v1527 = vsel %vm1521, 1.0, 0.0
        %v1528 = vsel %vm1522, 1.0, 0.0
        %v1529 = vmul.f32 %v1523, %v346
        %v1530 = vmul.f32 %v1524, %v347
        %v1531 = vmul.f32 %v1525, %v348
        %v1532 = vmul.f32 %v1526, %v349
        %v1533 = vmul.f32 %v1527, %v350
        %v1534 = vmul.f32 %v1528, %v351
        %v1535 = vld [vmem:[%s256] sm:$0xff]
        %v1536 = vld [vmem:[%s256 + $0x8] sm:$0xff]
        %v1537 = vld [vmem:[%s256 + $0x10] sm:$0xff]
        %v1538 = vld [vmem:[%s256 + $0x18] sm:$0xff]
        %v1539 = vld [vmem:[%s256 + $0x28] sm:$0xff]
        %v1540 = vld [vmem:[%s256 + $0x30] sm:$0xff]
        %v1541 = vld [vmem:[%s256 + $0x38] sm:$0xff]
        %v1542 = vld [vmem:[%s256 + $0x40] sm:$0xff]
        %v1543 = vld [vmem:[%s256 + $0x50] sm:$0xff]
        %v1544 = vld [vmem:[%s256 + $0x58] sm:$0xff]
        %v1545 = vld [vmem:[%s256 + $0x60] sm:$0xff]
        %v1546 = vld [vmem:[%s256 + $0x68] sm:$0xff]
        %v1547 = vld [vmem:[%s256 + $0x78] sm:$0xff]
        %v1548 = vld [vmem:[%s256 + $0x80] sm:$0xff]
        %v1549 = vld [vmem:[%s256 + $0x88] sm:$0xff]
        %v1550 = vld [vmem:[%s256 + $0x90] sm:$0xff]
        %v1551 = vld [vmem:[%s256 + $0xa0] sm:$0xff]
        %v1552 = vld [vmem:[%s256 + $0xa8] sm:$0xff]
        %v1553 = vld [vmem:[%s256 + $0xb0] sm:$0xff]
        %v1554 = vld [vmem:[%s256 + $0xb8] sm:$0xff]
        %v1555 = vld [vmem:[%s256 + $0xc8] sm:$0xff]
        %v1556 = vld [vmem:[%s256 + $0xd0] sm:$0xff]
        %v1557 = vld [vmem:[%s256 + $0xd8] sm:$0xff]
        %v1558 = vld [vmem:[%s256 + $0xe0] sm:$0xff]
        %v1559 = vld [vmem:[%s256 + $0x20] sm:$0x1]
        %v1560 = vld [vmem:[%s256 + $0x48] sm:$0x1]
        %v1561 = vld [vmem:[%s256 + $0x70] sm:$0x1]
        %v1562 = vld [vmem:[%s256 + $0x98] sm:$0x1]
        %v1563 = vld [vmem:[%s256 + $0xc0] sm:$0x1]
        %v1564 = vld [vmem:[%s256 + $0xe8] sm:$0x1]
        %vm1565 = vcmp.gt.f32.partialorder %v1294, 0.0
        %vm1566 = vcmp.gt.f32.partialorder %v1295, 0.0
        %vm1567 = vcmp.gt.f32.partialorder %v1296, 0.0
        %vm1568 = vcmp.gt.f32.partialorder %v1297, 0.0
        %vm1569 = vcmp.gt.f32.partialorder %v1298, 0.0
        %vm1570 = vcmp.gt.f32.partialorder %v1299, 0.0
        %vm1571 = vcmp.gt.f32.partialorder %v1300, 0.0
        %vm1572 = vcmp.gt.f32.partialorder %v1301, 0.0
        %vm1573 = vcmp.gt.f32.partialorder %v1302, 0.0
        %vm1574 = vcmp.gt.f32.partialorder %v1303, 0.0
        %vm1575 = vcmp.gt.f32.partialorder %v1304, 0.0
        %vm1576 = vcmp.gt.f32.partialorder %v1305, 0.0
        %vm1577 = vcmp.gt.f32.partialorder %v1306, 0.0
        %vm1578 = vcmp.gt.f32.partialorder %v1307, 0.0
        %vm1579 = vcmp.gt.f32.partialorder %v1308, 0.0
        %vm1580 = vcmp.gt.f32.partialorder %v1309, 0.0
        %vm1581 = vcmp.gt.f32.partialorder %v1310, 0.0
        %vm1582 = vcmp.gt.f32.partialorder %v1311, 0.0
        %vm1583 = vcmp.gt.f32.partialorder %v1312, 0.0
        %vm1584 = vcmp.gt.f32.partialorder %v1313, 0.0
        %vm1585 = vcmp.gt.f32.partialorder %v1314, 0.0
        %vm1586 = vcmp.gt.f32.partialorder %v1315, 0.0
        %vm1587 = vcmp.gt.f32.partialorder %v1316, 0.0
        %vm1588 = vcmp.gt.f32.partialorder %v1317, 0.0
        %v1589 = vsel %vm1565, %v1535, 0.0
        %v1590 = vsel %vm1566, %v1536, 0.0
        %v1591 = vsel %vm1567, %v1537, 0.0
        %v1592 = vsel %vm1568, %v1538, 0.0
        %v1593 = vsel %vm1569, %v1539, 0.0
        %v1594 = vsel %vm1570, %v1540, 0.0
        %v1595 = vsel %vm1571, %v1541, 0.0
        %v1596 = vsel %vm1572, %v1542, 0.0
        %v1597 = vsel %vm1573, %v1543, 0.0
        %v1598 = vsel %vm1574, %v1544, 0.0
        %v1599 = vsel %vm1575, %v1545, 0.0
        %v1600 = vsel %vm1576, %v1546, 0.0
        %v1601 = vsel %vm1577, %v1547, 0.0
        %v1602 = vsel %vm1578, %v1548, 0.0
        %v1603 = vsel %vm1579, %v1549, 0.0
        %v1604 = vsel %vm1580, %v1550, 0.0
        %v1605 = vsel %vm1581, %v1551, 0.0
        %v1606 = vsel %vm1582, %v1552, 0.0
        %v1607 = vsel %vm1583, %v1553, 0.0
        %v1608 = vsel %vm1584, %v1554, 0.0
        %v1609 = vsel %vm1585, %v1555, 0.0
        %v1610 = vsel %vm1586, %v1556, 0.0
        %v1611 = vsel %vm1587, %v1557, 0.0
        %v1612 = vsel %vm1588, %v1558, 0.0
        %v1613 = vsel %vm1318, %v1589, 0.0
        %v1614 = vsel %vm1318, %v1590, 0.0
        %v1615 = vadd.f32 %v1613, %v1614
        %v1616 = vsel %vm1318, %v1591, 0.0
        %v1617 = vadd.f32 %v1615, %v1616
        %v1618 = vsel %vm1318, %v1592, 0.0
        %v1619 = vadd.f32 %v1617, %v1618
        %v1620 = vsel %vm1318, %v1593, 0.0
        %v1621 = vadd.f32 %v1619, %v1620
        %v1622 = vsel %vm1318, %v1594, 0.0
        %v1623 = vadd.f32 %v1621, %v1622
        %v1624 = vsel %vm1318, %v1595, 0.0
        %v1625 = vadd.f32 %v1623, %v1624
        %v1626 = vsel %vm1318, %v1596, 0.0
        %v1627 = vadd.f32 %v1625, %v1626
        %v1628 = vsel %vm1318, %v1597, 0.0
        %v1629 = vadd.f32 %v1627, %v1628
        %v1630 = vsel %vm1318, %v1598, 0.0
        %v1631 = vadd.f32 %v1629, %v1630
        %v1632 = vsel %vm1318, %v1599, 0.0
        %v1633 = vadd.f32 %v1631, %v1632
        %v1634 = vsel %vm1318, %v1600, 0.0
        %v1635 = vadd.f32 %v1633, %v1634
        %v1636 = vsel %vm1318, %v1601, 0.0
        %v1637 = vadd.f32 %v1635, %v1636
        %v1638 = vsel %vm1318, %v1602, 0.0
        %v1639 = vadd.f32 %v1637, %v1638
        %v1640 = vsel %vm1318, %v1603, 0.0
        %v1641 = vadd.f32 %v1639, %v1640
        %v1642 = vsel %vm1318, %v1604, 0.0
        %v1643 = vadd.f32 %v1641, %v1642
        %v1644 = vsel %vm1318, %v1605, 0.0
        %v1645 = vadd.f32 %v1643, %v1644
        %v1646 = vsel %vm1318, %v1606, 0.0
        %v1647 = vadd.f32 %v1645, %v1646
        %v1648 = vsel %vm1318, %v1607, 0.0
        %v1649 = vadd.f32 %v1647, %v1648
        %v1650 = vsel %vm1318, %v1608, 0.0
        %v1651 = vadd.f32 %v1649, %v1650
        %v1652 = vsel %vm1318, %v1609, 0.0
        %v1653 = vadd.f32 %v1651, %v1652
        %v1654 = vsel %vm1318, %v1610, 0.0
        %v1655 = vadd.f32 %v1653, %v1654
        %v1656 = vsel %vm1318, %v1611, 0.0
        %v1657 = vadd.f32 %v1655, %v1656
        %v1658 = vsel %vm1318, %v1612, 0.0
        %v1659 = vadd.f32 %v1657, %v1658
        %1660 = vadd.xlane.f32.xlu0 %v1659
        %v1661 = vpop.xlane.xlu0 %1660
        %v1662 = vrot.slane %v1661, 4
        %v1663 = vadd.f32 %v1661, %v1662
        %v1664 = vrot.slane %v1663, 2
        %v1665 = vadd.f32 %v1663, %v1664
        %v1666 = vrot.slane %v1665, 1
        %v1667 = vadd.f32 %v1665, %v1666
        %s1668 = vtos %v1667
        %vm1669 = vcmp.gt.f32.partialorder %v1493, 0.0
        %vm1670 = vcmp.gt.f32.partialorder %v1494, 0.0
        %vm1671 = vcmp.gt.f32.partialorder %v1495, 0.0
        %vm1672 = vcmp.gt.f32.partialorder %v1496, 0.0
        %vm1673 = vcmp.gt.f32.partialorder %v1497, 0.0
        %vm1674 = vcmp.gt.f32.partialorder %v1498, 0.0
        %vm1675 = vcmp.gt.f32.partialorder %v1499, 0.0
        %vm1676 = vcmp.gt.f32.partialorder %v1500, 0.0
        %vm1677 = vcmp.gt.f32.partialorder %v1501, 0.0
        %vm1678 = vcmp.gt.f32.partialorder %v1502, 0.0
        %vm1679 = vcmp.gt.f32.partialorder %v1503, 0.0
        %vm1680 = vcmp.gt.f32.partialorder %v1504, 0.0
        %vm1681 = vcmp.gt.f32.partialorder %v1505, 0.0
        %vm1682 = vcmp.gt.f32.partialorder %v1506, 0.0
        %vm1683 = vcmp.gt.f32.partialorder %v1507, 0.0
        %vm1684 = vcmp.gt.f32.partialorder %v1508, 0.0
        %vm1685 = vcmp.gt.f32.partialorder %v1509, 0.0
        %vm1686 = vcmp.gt.f32.partialorder %v1510, 0.0
        %vm1687 = vcmp.gt.f32.partialorder %v1511, 0.0
        %vm1688 = vcmp.gt.f32.partialorder %v1512, 0.0
        %vm1689 = vcmp.gt.f32.partialorder %v1513, 0.0
        %vm1690 = vcmp.gt.f32.partialorder %v1514, 0.0
        %vm1691 = vcmp.gt.f32.partialorder %v1515, 0.0
        %vm1692 = vcmp.gt.f32.partialorder %v1516, 0.0
        %1717 = vrot.lane.b32.xlu0 %v1535, 99
        %v1718 = vpop.permute.xlu0 %1717
        %1719 = vrot.lane.b32.xlu0 %v1536, 99
        %v1720 = vpop.permute.xlu0 %1719
        %1721 = vrot.lane.b32.xlu0 %v1537, 99
        %v1722 = vpop.permute.xlu0 %1721
        %1723 = vrot.lane.b32.xlu0 %v1538, 99
        %v1724 = vpop.permute.xlu0 %1723
        %1725 = vrot.lane.b32.xlu0 %v1539, 99
        %v1726 = vpop.permute.xlu0 %1725
        %1727 = vrot.lane.b32.xlu0 %v1540, 99
        %v1728 = vpop.permute.xlu0 %1727
        %1729 = vrot.lane.b32.xlu0 %v1541, 99
        %v1730 = vpop.permute.xlu0 %1729
        %1731 = vrot.lane.b32.xlu0 %v1542, 99
        %v1732 = vpop.permute.xlu0 %1731
        %1733 = vrot.lane.b32.xlu0 %v1543, 99
        %v1734 = vpop.permute.xlu0 %1733
        %1735 = vrot.lane.b32.xlu0 %v1544, 99
        %v1736 = vpop.permute.xlu0 %1735
        %1737 = vrot.lane.b32.xlu0 %v1545, 99
        %v1738 = vpop.permute.xlu0 %1737
        %1739 = vrot.lane.b32.xlu0 %v1546, 99
        %v1740 = vpop.permute.xlu0 %1739
        %1741 = vrot.lane.b32.xlu0 %v1547, 99
        %v1742 = vpop.permute.xlu0 %1741
        %1743 = vrot.lane.b32.xlu0 %v1548, 99
        %v1744 = vpop.permute.xlu0 %1743
        %1745 = vrot.lane.b32.xlu0 %v1549, 99
        %v1746 = vpop.permute.xlu0 %1745
        %1747 = vrot.lane.b32.xlu0 %v1550, 99
        %v1748 = vpop.permute.xlu0 %1747
        %1749 = vrot.lane.b32.xlu0 %v1551, 99
        %v1750 = vpop.permute.xlu0 %1749
        %1751 = vrot.lane.b32.xlu0 %v1552, 99
        %v1752 = vpop.permute.xlu0 %1751
        %1753 = vrot.lane.b32.xlu0 %v1553, 99
        %v1754 = vpop.permute.xlu0 %1753
        %1755 = vrot.lane.b32.xlu0 %v1554, 99
        %v1756 = vpop.permute.xlu0 %1755
        %1757 = vrot.lane.b32.xlu0 %v1555, 99
        %v1758 = vpop.permute.xlu0 %1757
        %1759 = vrot.lane.b32.xlu0 %v1556, 99
        %v1760 = vpop.permute.xlu0 %1759
        %1761 = vrot.lane.b32.xlu0 %v1557, 99
        %v1762 = vpop.permute.xlu0 %1761
        %1763 = vrot.lane.b32.xlu0 %v1558, 99
        %v1764 = vpop.permute.xlu0 %1763
        %v1789 = vsel %vm1669, %v1718, 0.0
        %v1790 = vsel %vm1670, %v1720, 0.0
        %v1791 = vsel %vm1671, %v1722, 0.0
        %v1792 = vsel %vm1672, %v1724, 0.0
        %v1793 = vsel %vm1673, %v1726, 0.0
        %v1794 = vsel %vm1674, %v1728, 0.0
        %v1795 = vsel %vm1675, %v1730, 0.0
        %v1796 = vsel %vm1676, %v1732, 0.0
        %v1797 = vsel %vm1677, %v1734, 0.0
        %v1798 = vsel %vm1678, %v1736, 0.0
        %v1799 = vsel %vm1679, %v1738, 0.0
        %v1800 = vsel %vm1680, %v1740, 0.0
        %v1801 = vsel %vm1681, %v1742, 0.0
        %v1802 = vsel %vm1682, %v1744, 0.0
        %v1803 = vsel %vm1683, %v1746, 0.0
        %v1804 = vsel %vm1684, %v1748, 0.0
        %v1805 = vsel %vm1685, %v1750, 0.0
        %v1806 = vsel %vm1686, %v1752, 0.0
        %v1807 = vsel %vm1687, %v1754, 0.0
        %v1808 = vsel %vm1688, %v1756, 0.0
        %v1809 = vsel %vm1689, %v1758, 0.0
        %v1810 = vsel %vm1690, %v1760, 0.0
        %v1811 = vsel %vm1691, %v1762, 0.0
        %v1812 = vsel %vm1692, %v1764, 0.0
        %1837 = vrot.lane.b32.xlu0 %v1789, 125
        %v1838 = vpop.permute.xlu0 %1837
        %1839 = vrot.lane.b32.xlu0 %v1790, 125
        %v1840 = vpop.permute.xlu0 %1839
        %1841 = vrot.lane.b32.xlu0 %v1791, 125
        %v1842 = vpop.permute.xlu0 %1841
        %1843 = vrot.lane.b32.xlu0 %v1792, 125
        %v1844 = vpop.permute.xlu0 %1843
        %1845 = vrot.lane.b32.xlu0 %v1793, 125
        %v1846 = vpop.permute.xlu0 %1845
        %1847 = vrot.lane.b32.xlu0 %v1794, 125
        %v1848 = vpop.permute.xlu0 %1847
        %1849 = vrot.lane.b32.xlu0 %v1795, 125
        %v1850 = vpop.permute.xlu0 %1849
        %1851 = vrot.lane.b32.xlu0 %v1796, 125
        %v1852 = vpop.permute.xlu0 %1851
        %1853 = vrot.lane.b32.xlu0 %v1797, 125
        %v1854 = vpop.permute.xlu0 %1853
        %1855 = vrot.lane.b32.xlu0 %v1798, 125
        %v1856 = vpop.permute.xlu0 %1855
        %1857 = vrot.lane.b32.xlu0 %v1799, 125
        %v1858 = vpop.permute.xlu0 %1857
        %1859 = vrot.lane.b32.xlu0 %v1800, 125
        %v1860 = vpop.permute.xlu0 %1859
        %1861 = vrot.lane.b32.xlu0 %v1801, 125
        %v1862 = vpop.permute.xlu0 %1861
        %1863 = vrot.lane.b32.xlu0 %v1802, 125
        %v1864 = vpop.permute.xlu0 %1863
        %1865 = vrot.lane.b32.xlu0 %v1803, 125
        %v1866 = vpop.permute.xlu0 %1865
        %1867 = vrot.lane.b32.xlu0 %v1804, 125
        %v1868 = vpop.permute.xlu0 %1867
        %1869 = vrot.lane.b32.xlu0 %v1805, 125
        %v1870 = vpop.permute.xlu0 %1869
        %1871 = vrot.lane.b32.xlu0 %v1806, 125
        %v1872 = vpop.permute.xlu0 %1871
        %1873 = vrot.lane.b32.xlu0 %v1807, 125
        %v1874 = vpop.permute.xlu0 %1873
        %1875 = vrot.lane.b32.xlu0 %v1808, 125
        %v1876 = vpop.permute.xlu0 %1875
        %1877 = vrot.lane.b32.xlu0 %v1809, 125
        %v1878 = vpop.permute.xlu0 %1877
        %1879 = vrot.lane.b32.xlu0 %v1810, 125
        %v1880 = vpop.permute.xlu0 %1879
        %1881 = vrot.lane.b32.xlu0 %v1811, 125
        %v1882 = vpop.permute.xlu0 %1881
        %1883 = vrot.lane.b32.xlu0 %v1812, 125
        %v1884 = vpop.permute.xlu0 %1883
        %vm1909 = vcmask 7168
        %v1910 = vsel %vm1909, %v1838, 0.0
        %v1911 = vsel %vm1909, %v1840, 0.0
        %v1912 = vadd.f32 %v1910, %v1911
        %v1913 = vsel %vm1909, %v1842, 0.0
        %v1914 = vadd.f32 %v1912, %v1913
        %v1915 = vsel %vm1909, %v1844, 0.0
        %v1916 = vadd.f32 %v1914, %v1915
        %v1917 = vsel %vm1909, %v1846, 0.0
        %v1918 = vadd.f32 %v1916, %v1917
        %v1919 = vsel %vm1909, %v1848, 0.0
        %v1920 = vadd.f32 %v1918, %v1919
        %v1921 = vsel %vm1909, %v1850, 0.0
        %v1922 = vadd.f32 %v1920, %v1921
        %v1923 = vsel %vm1909, %v1852, 0.0
        %v1924 = vadd.f32 %v1922, %v1923
        %v1925 = vsel %vm1909, %v1854, 0.0
        %v1926 = vadd.f32 %v1924, %v1925
        %v1927 = vsel %vm1909, %v1856, 0.0
        %v1928 = vadd.f32 %v1926, %v1927
        %v1929 = vsel %vm1909, %v1858, 0.0
        %v1930 = vadd.f32 %v1928, %v1929
        %v1931 = vsel %vm1909, %v1860, 0.0
        %v1932 = vadd.f32 %v1930, %v1931
        %v1933 = vsel %vm1909, %v1862, 0.0
        %v1934 = vadd.f32 %v1932, %v1933
        %v1935 = vsel %vm1909, %v1864, 0.0
        %v1936 = vadd.f32 %v1934, %v1935
        %v1937 = vsel %vm1909, %v1866, 0.0
        %v1938 = vadd.f32 %v1936, %v1937
        %v1939 = vsel %vm1909, %v1868, 0.0
        %v1940 = vadd.f32 %v1938, %v1939
        %v1941 = vsel %vm1909, %v1870, 0.0
        %v1942 = vadd.f32 %v1940, %v1941
        %v1943 = vsel %vm1909, %v1872, 0.0
        %v1944 = vadd.f32 %v1942, %v1943
        %v1945 = vsel %vm1909, %v1874, 0.0
        %v1946 = vadd.f32 %v1944, %v1945
        %v1947 = vsel %vm1909, %v1876, 0.0
        %v1948 = vadd.f32 %v1946, %v1947
        %v1949 = vsel %vm1909, %v1878, 0.0
        %v1950 = vadd.f32 %v1948, %v1949
        %v1951 = vsel %vm1909, %v1880, 0.0
        %v1952 = vadd.f32 %v1950, %v1951
        %v1953 = vsel %vm1909, %v1882, 0.0
        %v1954 = vadd.f32 %v1952, %v1953
        %v1955 = vsel %vm1909, %v1884, 0.0
        %v1956 = vadd.f32 %v1954, %v1955
        %1957 = vadd.xlane.f32.xlu0 %v1956
        %v1958 = vpop.xlane.xlu0 %1957
        %v1959 = vrot.slane %v1958, 4
        %v1960 = vadd.f32 %v1958, %v1959
        %v1961 = vrot.slane %v1960, 2
        %v1962 = vadd.f32 %v1960, %v1961
        %v1963 = vrot.slane %v1962, 1
        %v1964 = vadd.f32 %v1962, %v1963
        %s1965 = vtos %v1964
        %s1966 = sadd.f32 %s1668, %s1965
        %vm1967 = vcmp.gt.f32.partialorder %v1529, 0.0
        %vm1968 = vcmp.gt.f32.partialorder %v1530, 0.0
        %vm1969 = vcmp.gt.f32.partialorder %v1531, 0.0
        %vm1970 = vcmp.gt.f32.partialorder %v1532, 0.0
        %vm1971 = vcmp.gt.f32.partialorder %v1533, 0.0
        %vm1972 = vcmp.gt.f32.partialorder %v1534, 0.0
        %v1973 = vsel %vm1967, %v1559, 0.0
        %v1974 = vsel %vm1968, %v1560, 0.0
        %v1975 = vsel %vm1969, %v1561, 0.0
        %v1976 = vsel %vm1970, %v1562, 0.0
        %v1977 = vsel %vm1971, %v1563, 0.0
        %v1978 = vsel %vm1972, %v1564, 0.0
        %vm1979 = vcmask 253952
        %v1980 = vsel %vm1979, %v1973, 0.0
        %v1981 = vsel %vm1979, %v1974, 0.0
        %v1982 = vadd.f32 %v1980, %v1981
        %v1983 = vsel %vm1979, %v1975, 0.0
        %v1984 = vadd.f32 %v1982, %v1983
        %v1985 = vsel %vm1979, %v1976, 0.0
        %v1986 = vadd.f32 %v1984, %v1985
        %v1987 = vsel %vm1979, %v1977, 0.0
        %v1988 = vadd.f32 %v1986, %v1987
        %v1989 = vsel %vm1979, %v1978, 0.0
        %v1990 = vadd.f32 %v1988, %v1989
        %1991 = vadd.xlane.f32.xlu0 %v1990
        %v1992 = vpop.xlane.xlu0 %1991
        %v1993 = vrot.slane %v1992, 4
        %v1994 = vadd.f32 %v1992, %v1993
        %v1995 = vrot.slane %v1994, 2
        %v1996 = vadd.f32 %v1994, %v1995
        %v1997 = vrot.slane %v1996, 1
        %v1998 = vadd.f32 %v1996, %v1997
        %s1999 = vtos %v1998
        %s2000 = sadd.f32 %s1966, %s1999
        %v2001 = vadd.f32 %v1393, %v1331
        %v2002 = vadd.f32 %v2001, %v1334
        %v2003 = vadd.f32 %v2002, %v1337
        %v2004 = vadd.f32 %v2003, %v1340
        %v2005 = vadd.f32 %v2004, %v1343
        %v2006 = vadd.f32 %v2005, %v1346
        %v2007 = vadd.f32 %v2006, %v1349
        %v2008 = vadd.f32 %v2007, %v1352
        %v2009 = vadd.f32 %v2008, %v1355
        %v2010 = vadd.f32 %v2009, %v1358
        %v2011 = vadd.f32 %v2010, %v1361
        %v2012 = vadd.f32 %v2011, %v1364
        %v2013 = vadd.f32 %v2012, %v1367
        %v2014 = vadd.f32 %v2013, %v1370
        %v2015 = vadd.f32 %v2014, %v1373
        %v2016 = vadd.f32 %v2015, %v1376
        %v2017 = vadd.f32 %v2016, %v1379
        %v2018 = vadd.f32 %v2017, %v1382
        %v2019 = vadd.f32 %v2018, %v1385
        %v2020 = vadd.f32 %v2019, %v1388
        %2021 = vadd.xlane.f32.xlu0 %v2020
        %v2022 = vpop.xlane.xlu0 %2021
        %v2023 = vrot.slane %v2022, 4
        %v2024 = vadd.f32 %v2022, %v2023
        %v2025 = vrot.slane %v2024, 2
        %v2026 = vadd.f32 %v2024, %v2025
        %v2027 = vrot.slane %v2026, 1
        %v2028 = vadd.f32 %v2026, %v2027
        %s2029 = vtos %v2028
        %2054 = vrot.lane.b32.xlu0 %v1493, 125
        %v2055 = vpop.permute.xlu0 %2054
        %2056 = vrot.lane.b32.xlu0 %v1494, 125
        %v2057 = vpop.permute.xlu0 %2056
        %2058 = vrot.lane.b32.xlu0 %v1495, 125
        %v2059 = vpop.permute.xlu0 %2058
        %2060 = vrot.lane.b32.xlu0 %v1496, 125
        %v2061 = vpop.permute.xlu0 %2060
        %2062 = vrot.lane.b32.xlu0 %v1497, 125
        %v2063 = vpop.permute.xlu0 %2062
        %2064 = vrot.lane.b32.xlu0 %v1498, 125
        %v2065 = vpop.permute.xlu0 %2064
        %2066 = vrot.lane.b32.xlu0 %v1499, 125
        %v2067 = vpop.permute.xlu0 %2066
        %2068 = vrot.lane.b32.xlu0 %v1500, 125
        %v2069 = vpop.permute.xlu0 %2068
        %2070 = vrot.lane.b32.xlu0 %v1501, 125
        %v2071 = vpop.permute.xlu0 %2070
        %2072 = vrot.lane.b32.xlu0 %v1502, 125
        %v2073 = vpop.permute.xlu0 %2072
        %2074 = vrot.lane.b32.xlu0 %v1503, 125
        %v2075 = vpop.permute.xlu0 %2074
        %2076 = vrot.lane.b32.xlu0 %v1504, 125
        %v2077 = vpop.permute.xlu0 %2076
        %2078 = vrot.lane.b32.xlu0 %v1505, 125
        %v2079 = vpop.permute.xlu0 %2078
        %2080 = vrot.lane.b32.xlu0 %v1506, 125
        %v2081 = vpop.permute.xlu0 %2080
        %2082 = vrot.lane.b32.xlu0 %v1507, 125
        %v2083 = vpop.permute.xlu0 %2082
        %2084 = vrot.lane.b32.xlu0 %v1508, 125
        %v2085 = vpop.permute.xlu0 %2084
        %2086 = vrot.lane.b32.xlu0 %v1509, 125
        %v2087 = vpop.permute.xlu0 %2086
        %2088 = vrot.lane.b32.xlu0 %v1510, 125
        %v2089 = vpop.permute.xlu0 %2088
        %2090 = vrot.lane.b32.xlu0 %v1511, 125
        %v2091 = vpop.permute.xlu0 %2090
        %2092 = vrot.lane.b32.xlu0 %v1512, 125
        %v2093 = vpop.permute.xlu0 %2092
        %2094 = vrot.lane.b32.xlu0 %v1513, 125
        %v2095 = vpop.permute.xlu0 %2094
        %2096 = vrot.lane.b32.xlu0 %v1514, 125
        %v2097 = vpop.permute.xlu0 %2096
        %2098 = vrot.lane.b32.xlu0 %v1515, 125
        %v2099 = vpop.permute.xlu0 %2098
        %2100 = vrot.lane.b32.xlu0 %v1516, 125
        %v2101 = vpop.permute.xlu0 %2100
        %v2126 = vsel %vm1909, %v2055, 0.0
        %v2127 = vsel %vm1909, %v2057, 0.0
        %v2128 = vadd.f32 %v2126, %v2127
        %v2129 = vsel %vm1909, %v2059, 0.0
        %v2130 = vadd.f32 %v2128, %v2129
        %v2131 = vsel %vm1909, %v2061, 0.0
        %v2132 = vadd.f32 %v2130, %v2131
        %v2133 = vsel %vm1909, %v2063, 0.0
        %v2134 = vadd.f32 %v2132, %v2133
        %v2135 = vsel %vm1909, %v2065, 0.0
        %v2136 = vadd.f32 %v2134, %v2135
        %v2137 = vsel %vm1909, %v2067, 0.0
        %v2138 = vadd.f32 %v2136, %v2137
        %v2139 = vsel %vm1909, %v2069, 0.0
        %v2140 = vadd.f32 %v2138, %v2139
        %v2141 = vsel %vm1909, %v2071, 0.0
        %v2142 = vadd.f32 %v2140, %v2141
        %v2143 = vsel %vm1909, %v2073, 0.0
        %v2144 = vadd.f32 %v2142, %v2143
        %v2145 = vsel %vm1909, %v2075, 0.0
        %v2146 = vadd.f32 %v2144, %v2145
        %v2147 = vsel %vm1909, %v2077, 0.0
        %v2148 = vadd.f32 %v2146, %v2147
        %v2149 = vsel %vm1909, %v2079, 0.0
        %v2150 = vadd.f32 %v2148, %v2149
        %v2151 = vsel %vm1909, %v2081, 0.0
        %v2152 = vadd.f32 %v2150, %v2151
        %v2153 = vsel %vm1909, %v2083, 0.0
        %v2154 = vadd.f32 %v2152, %v2153
        %v2155 = vsel %vm1909, %v2085, 0.0
        %v2156 = vadd.f32 %v2154, %v2155
        %v2157 = vsel %vm1909, %v2087, 0.0
        %v2158 = vadd.f32 %v2156, %v2157
        %v2159 = vsel %vm1909, %v2089, 0.0
        %v2160 = vadd.f32 %v2158, %v2159
        %v2161 = vsel %vm1909, %v2091, 0.0
        %v2162 = vadd.f32 %v2160, %v2161
        %v2163 = vsel %vm1909, %v2093, 0.0
        %v2164 = vadd.f32 %v2162, %v2163
        %v2165 = vsel %vm1909, %v2095, 0.0
        %v2166 = vadd.f32 %v2164, %v2165
        %v2167 = vsel %vm1909, %v2097, 0.0
        %v2168 = vadd.f32 %v2166, %v2167
        %v2169 = vsel %vm1909, %v2099, 0.0
        %v2170 = vadd.f32 %v2168, %v2169
        %v2171 = vsel %vm1909, %v2101, 0.0
        %v2172 = vadd.f32 %v2170, %v2171
        %2173 = vadd.xlane.f32.xlu0 %v2172
        %v2174 = vpop.xlane.xlu0 %2173
        %v2175 = vrot.slane %v2174, 4
        %v2176 = vadd.f32 %v2174, %v2175
        %v2177 = vrot.slane %v2176, 2
        %v2178 = vadd.f32 %v2176, %v2177
        %v2179 = vrot.slane %v2178, 1
        %v2180 = vadd.f32 %v2178, %v2179
        %s2181 = vtos %v2180
        %s2182 = sadd.f32 %s2029, %s2181
        %v2183 = vsel %vm1979, %v1529, 0.0
        %v2184 = vsel %vm1979, %v1530, 0.0
        %v2185 = vadd.f32 %v2183, %v2184
        %v2186 = vsel %vm1979, %v1531, 0.0
        %v2187 = vadd.f32 %v2185, %v2186
        %v2188 = vsel %vm1979, %v1532, 0.0
        %v2189 = vadd.f32 %v2187, %v2188
        %v2190 = vsel %vm1979, %v1533, 0.0
        %v2191 = vadd.f32 %v2189, %v2190
        %v2192 = vsel %vm1979, %v1534, 0.0
        %v2193 = vadd.f32 %v2191, %v2192
        %2194 = vadd.xlane.f32.xlu0 %v2193
        %v2195 = vpop.xlane.xlu0 %2194
        %v2196 = vrot.slane %v2195, 4
        %v2197 = vadd.f32 %v2195, %v2196
        %v2198 = vrot.slane %v2197, 2
        %v2199 = vadd.f32 %v2197, %v2198
        %v2200 = vrot.slane %v2199, 1
        %v2201 = vadd.f32 %v2199, %v2200
        %s2202 = vtos %v2201
        %s2203 = sadd.f32 %s2182, %s2202
        %v2204 = vlaneseq
        %v2205 = vand.u32 %v2204, 127
        %vm2206 = vcmp.eq.s32.totalorder %v2205, 0
        %vm2207 = vcmp.eq.s32.totalorder %v2205, 1
        %v2208 = vstv %s2203
        %v2209 = vsel %vm2207, %v2208, 0.0
        %v2210 = vstv %s2000
        %v2211 = vsel %vm2206, %v2210, %v2209
        %2212 = vst [vmem:[%s261] sm:$0xff] %v2211
        %p2213 = scmp.lt.s32.totalorder %s16, 1
        %s2214 = scalar_select %p2213, %s16, 1
        %s2215 = smul.addr %s2214, 8
        %s2216 = scalar_lea.vmem %s4, %s2215
        // Predicated region
        $region41: #{fine_matching_loss.1} parent=35 // pred_check
          %p2217 = pneg %p133
        $region42: #{fine_matching_loss.1} parent=35 // pred_check_branch
          %2219 = sbr.rel (%p2217) target = $region44
        $region43: #{fine_matching_loss.1} parent=35 // pred_region
          _
        $region44: #{fine_matching_loss.1} parent=35 // pred_fallthru
          _
      $region36: #{fine_matching_loss.1} parent=5 // pred_fallthru
        _
      %p2220 = scmp.le.s32.totalorder 2, %s11
      // Predicated region
      $region45: #{fine_matching_loss.1} parent=5 // pred_check
        %p2221 = pneg %p2220
      $region46: #{fine_matching_loss.1} parent=5 // pred_check_branch
        %2223 = sbr.rel (%p2221) target = $region48
      $region47: #{fine_matching_loss.1} parent=5 // pred_region
        %s2224 = ssub.s32 %s11, 2
        // Predicated region
        $region49: #{fine_matching_loss.1} parent=47 // pred_check
          %p2225 = pneg %p139
        $region50: #{fine_matching_loss.1} parent=47 // pred_check_branch
          %2227 = sbr.rel (%p2225) target = $region52
        $region51: #{fine_matching_loss.1} parent=47 // pred_region
          %p2228 = scmp.lt.s32.totalorder %s17, 1
          %s2229 = scalar_select %p2228, %s17, 1
          %s2230 = smul.addr %s2229, 8
          %s2231 = scalar_lea.vmem %s4, %s2230
        $region52: #{fine_matching_loss.1} parent=47 // pred_fallthru
          _
      $region48: #{fine_matching_loss.1} parent=5 // pred_fallthru
        _
    $region6: #{fine_matching_loss.1} parent=1 // loop_footer
      %s15 = sadd.s32 1, %s11
    $region7: #{fine_matching_loss.1} parent=1 // loop_footer_branch
      %10 = sbr.rel target = $region3
    $region8: #{fine_matching_loss.1} parent=1 // loop_exit
      _
    %2232 = vsyncpa [#allocation3], 1
    %s2233 = scalar_lea.sflag [#allocation3], 1
    %2234 = vsyncpa %s2233, 1

</llo_original>
